<compile_context>
chip_gen: v5e
topology: v5e:2x2
jax: 0.10.0
libtpu: 0.0.40
codegen_flags: <defaults>
</compile_context>

<pallas_src>
import numpy as np
import jax
import jax.numpy as jnp
from jax.experimental import pallas as pl
from jax.experimental.pallas import tpu as pltpu


# ------------------------------ fused kernel --------------------------------

def _lenet_fused_kernel(x_ref, t1_ref, b1_ref, ph1_ref, pw1_ref,
                        t2_ref, b2_ref, ph2_ref, pw2_ref,
                        wf1_ref, bf1_ref, wf2_ref, bf2_ref, wf3_ref, bf3_ref,
                        out_ref):
    f32 = jnp.float32
    b = pl.program_id(0)

    # input image, rows = h (32), lanes = w*3 + c (96 real, padded to 128)
    x = x_ref[...]                                              # (32, 128)

    # ---- conv1 (5x5, 3->6) + bias + ReLU; lanes = w*6 + c (168 real / 256 pad)
    acc = jnp.dot(x[0:28, :], t1_ref[0], preferred_element_type=f32)
    for kh in range(1, 5):
        acc = acc + jnp.dot(x[kh:kh + 28, :], t1_ref[kh],
                            preferred_element_type=f32)
    h1 = jnp.maximum(acc + b1_ref[...], 0.0)                    # (28, 256)

    # ---- maxpool 2x2 via 0/1 selection matmuls (rows, then width groups)
    r1 = jnp.maximum(jnp.dot(ph1_ref[0], h1, preferred_element_type=f32),
                     jnp.dot(ph1_ref[1], h1, preferred_element_type=f32))   # (14, 256)
    p1 = jnp.maximum(jnp.dot(r1, pw1_ref[0], preferred_element_type=f32),
                     jnp.dot(r1, pw1_ref[1], preferred_element_type=f32))   # (14, 128), 84 real

    # ---- conv2 (5x5, 6->16) + bias + ReLU; lanes = w*16 + c (160 real / 256 pad)
    acc2 = jnp.dot(p1[0:10, :], t2_ref[0], preferred_element_type=f32)
    for kh in range(1, 5):
        acc2 = acc2 + jnp.dot(p1[kh:kh + 10, :], t2_ref[kh],
                              preferred_element_type=f32)
    h2 = jnp.maximum(acc2 + b2_ref[...], 0.0)                   # (10, 256)

    r2 = jnp.maximum(jnp.dot(ph2_ref[0], h2, preferred_element_type=f32),
                     jnp.dot(ph2_ref[1], h2, preferred_element_type=f32))   # (5, 256)
    p2 = jnp.maximum(jnp.dot(r2, pw2_ref[0], preferred_element_type=f32),
                     jnp.dot(r2, pw2_ref[1], preferred_element_type=f32))   # (5, 128), 80 real

    # ---- fc1 (400 -> 120): flatten folded into per-row weight slabs
    f1 = jnp.dot(p2[0:1, :], wf1_ref[0], preferred_element_type=f32)
    for h in range(1, 5):
        f1 = f1 + jnp.dot(p2[h:h + 1, :], wf1_ref[h], preferred_element_type=f32)
    f1 = jnp.maximum(f1 + bf1_ref[...], 0.0)                    # (1, 128), 120 real

    # ---- fc2 (120 -> 84) + ReLU, fc3 (84 -> 10)
    f2 = jnp.maximum(jnp.dot(f1, wf2_ref[...], preferred_element_type=f32)
                     + bf2_ref[...], 0.0)                       # (1, 128), 84 real
    f3 = jnp.dot(f2, wf3_ref[...], preferred_element_type=f32) + bf3_ref[...]

    out_ref[pl.ds(b, 1), :] = f3                                # lane-dense (1, 128) row


# --------------------------- host-side weight packing ------------------------

def pack_params(p):
    """One-time repack of PyTorch-layout params into MXU/lane-friendly slabs."""
    f32 = np.float32
    conv1_w = np.asarray(p["conv1_w"], f32)   # (6, 3, 5, 5)
    conv1_b = np.asarray(p["conv1_b"], f32)
    conv2_w = np.asarray(p["conv2_w"], f32)   # (16, 6, 5, 5)
    conv2_b = np.asarray(p["conv2_b"], f32)
    fc1_w = np.asarray(p["fc1_w"], f32)       # (120, 400)
    fc1_b = np.asarray(p["fc1_b"], f32)
    fc2_w = np.asarray(p["fc2_w"], f32)       # (84, 120)
    fc2_b = np.asarray(p["fc2_b"], f32)
    fc3_w = np.asarray(p["fc3_w"], f32)       # (10, 84)
    fc3_b = np.asarray(p["fc3_b"], f32)

    # conv1 banded weights: T1[kh, (w+kw)*3+ci, w*6+co] = conv1_w[co, ci, kh, kw]
    T1 = np.zeros((5, 128, 256), f32)
    for kh in range(5):
        for kw in range(5):
            slab = conv1_w[:, :, kh, kw].T                     # (ci=3, co=6)
            for w in range(28):
                T1[kh, (w + kw) * 3:(w + kw) * 3 + 3, w * 6:w * 6 + 6] = slab
    b1t = np.zeros((1, 256), f32)
    b1t[0, :168] = np.tile(conv1_b, 28)

    # pool1 selection matrices (rows 28->14, width groups of 6: 28->14)
    PH1 = np.zeros((2, 14, 28), f32)
    for i in range(14):
        PH1[0, i, 2 * i] = 1.0
        PH1[1, i, 2 * i + 1] = 1.0
    PW1 = np.zeros((2, 256, 128), f32)
    for par in range(2):
        for w in range(14):
            for c in range(6):
                PW1[par, (2 * w + par) * 6 + c, w * 6 + c] = 1.0

    # conv2 banded weights: T2[kh, (w+kw)*6+ci, w*16+co] = conv2_w[co, ci, kh, kw]
    T2 = np.zeros((5, 128, 256), f32)
    for kh in range(5):
        for kw in range(5):
            slab = conv2_w[:, :, kh, kw].T                     # (ci=6, co=16)
            for w in range(10):
                T2[kh, (w + kw) * 6:(w + kw) * 6 + 6, w * 16:w * 16 + 16] = slab
    b2t = np.zeros((1, 256), f32)
    b2t[0, :160] = np.tile(conv2_b, 10)

    # pool2 selection matrices (rows 10->5, width groups of 16: 10->5)
    PH2 = np.zeros((2, 5, 10), f32)
    for i in range(5):
        PH2[0, i, 2 * i] = 1.0
        PH2[1, i, 2 * i + 1] = 1.0
    PW2 = np.zeros((2, 256, 128), f32)
    for par in range(2):
        for w in range(5):
            for c in range(16):
                PW2[par, (2 * w + par) * 16 + c, w * 16 + c] = 1.0

    # fc1: permute NCHW flatten (c*25+h*5+w) -> our (h, w, c) lane layout (w*16+c)
    Wf1 = np.zeros((5, 128, 128), f32)
    w1r = fc1_w.reshape(120, 16, 5, 5)                         # (o, c, h, w)
    w1r = np.transpose(w1r, (2, 3, 1, 0)).reshape(5, 80, 120)  # (h, w*16+c, o)
    Wf1[:, :80, :120] = w1r
    bf1 = np.zeros((1, 128), f32); bf1[0, :120] = fc1_b

    Wf2 = np.zeros((128, 128), f32); Wf2[:120, :84] = fc2_w.T
    bf2 = np.zeros((1, 128), f32); bf2[0, :84] = fc2_b
    Wf3 = np.zeros((128, 128), f32); Wf3[:84, :10] = fc3_w.T
    bf3 = np.zeros((1, 128), f32); bf3[0, :10] = fc3_b

    return tuple(jnp.asarray(a) for a in
                 (T1, b1t, PH1, PW1, T2, b2t, PH2, PW2,
                  Wf1, bf1, Wf2, bf2, Wf3, bf3))


# -------------------------------- forward pass -------------------------------

def net_forward(x, packed):
    """x: (N, 3, 32, 32) float32 NCHW -> logits (N, 10)."""
    N = x.shape[0]
    # Single input relayout: NCHW -> per-image rows=(h), lanes=(w*3+c) padded to 128.
    x_rows = jnp.transpose(x, (0, 2, 3, 1)).reshape(N, 32, 96)
    x_rows = jnp.pad(x_rows, ((0, 0), (0, 0), (0, 32))).astype(jnp.float32)

    (T1, b1t, PH1, PW1, T2, b2t, PH2, PW2,
     Wf1, bf1, Wf2, bf2, Wf3, bf3) = packed

    out = pl.pallas_call(
        _lenet_fused_kernel,
        out_shape=jax.ShapeDtypeStruct((N, 128), jnp.float32),
        grid=(N,),
        in_specs=[
            pl.BlockSpec((None, 32, 128), lambda b: (b, 0, 0)),   # per-image input
            pl.BlockSpec((5, 128, 256), lambda b: (0, 0, 0)),     # T1
            pl.BlockSpec((1, 256), lambda b: (0, 0)),             # conv1 bias (tiled)
            pl.BlockSpec((2, 14, 28), lambda b: (0, 0, 0)),       # pool1 row select
            pl.BlockSpec((2, 256, 128), lambda b: (0, 0, 0)),     # pool1 lane select
            pl.BlockSpec((5, 128, 256), lambda b: (0, 0, 0)),     # T2
            pl.BlockSpec((1, 256), lambda b: (0, 0)),             # conv2 bias (tiled)
            pl.BlockSpec((2, 5, 10), lambda b: (0, 0, 0)),        # pool2 row select
            pl.BlockSpec((2, 256, 128), lambda b: (0, 0, 0)),     # pool2 lane select
            pl.BlockSpec((5, 128, 128), lambda b: (0, 0, 0)),     # fc1 (per-row slabs)
            pl.BlockSpec((1, 128), lambda b: (0, 0)),             # fc1 bias
            pl.BlockSpec((128, 128), lambda b: (0, 0)),           # fc2
            pl.BlockSpec((1, 128), lambda b: (0, 0)),             # fc2 bias
            pl.BlockSpec((128, 128), lambda b: (0, 0)),           # fc3
            pl.BlockSpec((1, 128), lambda b: (0, 0)),             # fc3 bias
        ],
        out_specs=pl.BlockSpec((N, 128), lambda b: (0, 0)),       # resident, row b written per step
        compiler_params=pltpu.CompilerParams(
            dimension_semantics=("arbitrary",)),
    )(x_rows, T1, b1t, PH1, PW1, T2, b2t, PH2, PW2,
      Wf1, bf1, Wf2, bf2, Wf3, bf3)

    return out[:, :10]


# ------------------------------ parameter init ------------------------------

def init_params(key):
    def uniform(key, shape, fan_in):
        bound = 1.0 / jnp.sqrt(fan_in)
        return jax.random.uniform(key, shape, jnp.float32, -bound, bound)

    keys = jax.random.split(key, 10)
    p = {}
    p["conv1_w"] = uniform(keys[0], (6, 3, 5, 5), 3 * 5 * 5)
    p["conv1_b"] = uniform(keys[1], (6,), 3 * 5 * 5)
    p["conv2_w"] = uniform(keys[2], (16, 6, 5, 5), 6 * 5 * 5)
    p["conv2_b"] = uniform(keys[3], (16,), 6 * 5 * 5)
    p["fc1_w"] = uniform(keys[4], (120, 400), 400)
    p["fc1_b"] = uniform(keys[5], (120,), 400)
    p["fc2_w"] = uniform(keys[6], (84, 120), 120)
    p["fc2_b"] = uniform(keys[7], (84,), 120)
    p["fc3_w"] = uniform(keys[8], (10, 84), 84)
    p["fc3_b"] = uniform(keys[9], (10,), 84)
    return p


if __name__ == "__main__":
    key = jax.random.PRNGKey(0)
    k_params, k_input = jax.random.split(key)
    params = init_params(k_params)
    packed = pack_params(params)          # one-time host-side weight repack

    # Input spatial size fixed to 32x32 by fc1 (16*5*5 flatten); batch = 2.
    x = jax.random.normal(k_input, (2, 3, 32, 32), dtype=jnp.float32)

    out = jax.jit(net_forward)(x, packed)
    out = jax.block_until_ready(out)
    assert out.shape == (2, 10) and out.dtype == jnp.float32
    print("KERNEL_OK")
</pallas_src>

<mosaic_0001>
module attributes {stable_mosaic.version = 11 : i64} {
  func.func @_lenet_fused_kernel(%arg0: i32, %arg1: memref<1x32x128xf32, #tpu.memory_space<vmem>>, %arg2: memref<5x128x256xf32, #tpu.memory_space<vmem>>, %arg3: memref<1x256xf32, #tpu.memory_space<vmem>>, %arg4: memref<2x14x28xf32, #tpu.memory_space<vmem>>, %arg5: memref<2x256x128xf32, #tpu.memory_space<vmem>>, %arg6: memref<5x128x256xf32, #tpu.memory_space<vmem>>, %arg7: memref<1x256xf32, #tpu.memory_space<vmem>>, %arg8: memref<2x5x10xf32, #tpu.memory_space<vmem>>, %arg9: memref<2x256x128xf32, #tpu.memory_space<vmem>>, %arg10: memref<5x128x128xf32, #tpu.memory_space<vmem>>, %arg11: memref<1x128xf32, #tpu.memory_space<vmem>>, %arg12: memref<128x128xf32, #tpu.memory_space<vmem>>, %arg13: memref<1x128xf32, #tpu.memory_space<vmem>>, %arg14: memref<128x128xf32, #tpu.memory_space<vmem>>, %arg15: memref<1x128xf32, #tpu.memory_space<vmem>>, %arg16: memref<2x128xf32, #tpu.memory_space<vmem>>) attributes {dimension_semantics = [#tpu.dimension_semantics<arbitrary>], iteration_bounds = array<i64: 2>, scalar_prefetch = 0 : i64, scratch_operands = 0 : i64, tpu.core_type = #tpu.core_type<tc>, window_params = [{transform_indices = @transform_0, window_bounds = array<i64: 1, 32, 128>}, {pipeline_mode = #tpu.pipeline_mode<synchronous>, transform_indices = @transform_1, window_bounds = array<i64: 5, 128, 256>}, {pipeline_mode = #tpu.pipeline_mode<synchronous>, transform_indices = @transform_2, window_bounds = array<i64: 1, 256>}, {pipeline_mode = #tpu.pipeline_mode<synchronous>, transform_indices = @transform_3, window_bounds = array<i64: 2, 14, 28>}, {pipeline_mode = #tpu.pipeline_mode<synchronous>, transform_indices = @transform_4, window_bounds = array<i64: 2, 256, 128>}, {pipeline_mode = #tpu.pipeline_mode<synchronous>, transform_indices = @transform_5, window_bounds = array<i64: 5, 128, 256>}, {pipeline_mode = #tpu.pipeline_mode<synchronous>, transform_indices = @transform_6, window_bounds = array<i64: 1, 256>}, {pipeline_mode = #tpu.pipeline_mode<synchronous>, transform_indices = @transform_7, window_bounds = array<i64: 2, 5, 10>}, {pipeline_mode = #tpu.pipeline_mode<synchronous>, transform_indices = @transform_8, window_bounds = array<i64: 2, 256, 128>}, {pipeline_mode = #tpu.pipeline_mode<synchronous>, transform_indices = @transform_9, window_bounds = array<i64: 5, 128, 128>}, {pipeline_mode = #tpu.pipeline_mode<synchronous>, transform_indices = @transform_10, window_bounds = array<i64: 1, 128>}, {pipeline_mode = #tpu.pipeline_mode<synchronous>, transform_indices = @transform_11, window_bounds = array<i64: 128, 128>}, {pipeline_mode = #tpu.pipeline_mode<synchronous>, transform_indices = @transform_12, window_bounds = array<i64: 1, 128>}, {pipeline_mode = #tpu.pipeline_mode<synchronous>, transform_indices = @transform_13, window_bounds = array<i64: 128, 128>}, {pipeline_mode = #tpu.pipeline_mode<synchronous>, transform_indices = @transform_14, window_bounds = array<i64: 1, 128>}, {pipeline_mode = #tpu.pipeline_mode<synchronous>, transform_indices = @transform_15, window_bounds = array<i64: 2, 128>}]} {
    %c0 = arith.constant 0 : index
    %c0_0 = arith.constant 0 : index
    %c0_1 = arith.constant 0 : index
    %0 = vector.load %arg1[%c0, %c0_0, %c0_1] : memref<1x32x128xf32, #tpu.memory_space<vmem>>, vector<1x32x128xf32>
    %1 = vector.shape_cast %0 : vector<1x32x128xf32> to vector<32x128xf32>
    %2 = vector.extract_strided_slice %1 {offsets = [0, 0], sizes = [28, 128], strides = [1, 1]} : vector<32x128xf32> to vector<28x128xf32>
    %c0_2 = arith.constant 0 : index
    %c0_3 = arith.constant 0 : index
    %c0_4 = arith.constant 0 : index
    %3 = vector.load %arg2[%c0_2, %c0_3, %c0_4] : memref<5x128x256xf32, #tpu.memory_space<vmem>>, vector<1x128x256xf32>
    %4 = vector.shape_cast %3 : vector<1x128x256xf32> to vector<128x256xf32>
    %cst = arith.constant dense<0.000000e+00> : vector<28x256xf32>
    %5 = tpu.matmul %2, %4, %cst {dimension_numbers = #tpu.dot_dimension_numbers<[1], [0], [0], [1], [0, 0, 1, 1], [], []>} : vector<28x128xf32>, vector<128x256xf32>, vector<28x256xf32> -> vector<28x256xf32>
    %6 = vector.extract_strided_slice %1 {offsets = [1, 0], sizes = [28, 128], strides = [1, 1]} : vector<32x128xf32> to vector<28x128xf32>
    %c1 = arith.constant 1 : index
    %c0_5 = arith.constant 0 : index
    %c0_6 = arith.constant 0 : index
    %7 = vector.load %arg2[%c1, %c0_5, %c0_6] : memref<5x128x256xf32, #tpu.memory_space<vmem>>, vector<1x128x256xf32>
    %8 = vector.shape_cast %7 : vector<1x128x256xf32> to vector<128x256xf32>
    %cst_7 = arith.constant dense<0.000000e+00> : vector<28x256xf32>
    %9 = tpu.matmul %6, %8, %cst_7 {dimension_numbers = #tpu.dot_dimension_numbers<[1], [0], [0], [1], [0, 0, 1, 1], [], []>} : vector<28x128xf32>, vector<128x256xf32>, vector<28x256xf32> -> vector<28x256xf32>
    %10 = arith.addf %5, %9 : vector<28x256xf32>
    %11 = vector.extract_strided_slice %1 {offsets = [2, 0], sizes = [28, 128], strides = [1, 1]} : vector<32x128xf32> to vector<28x128xf32>
    %c2 = arith.constant 2 : index
    %c0_8 = arith.constant 0 : index
    %c0_9 = arith.constant 0 : index
    %12 = vector.load %arg2[%c2, %c0_8, %c0_9] : memref<5x128x256xf32, #tpu.memory_space<vmem>>, vector<1x128x256xf32>
    %13 = vector.shape_cast %12 : vector<1x128x256xf32> to vector<128x256xf32>
    %cst_10 = arith.constant dense<0.000000e+00> : vector<28x256xf32>
    %14 = tpu.matmul %11, %13, %cst_10 {dimension_numbers = #tpu.dot_dimension_numbers<[1], [0], [0], [1], [0, 0, 1, 1], [], []>} : vector<28x128xf32>, vector<128x256xf32>, vector<28x256xf32> -> vector<28x256xf32>
    %15 = arith.addf %10, %14 : vector<28x256xf32>
    %16 = vector.extract_strided_slice %1 {offsets = [3, 0], sizes = [28, 128], strides = [1, 1]} : vector<32x128xf32> to vector<28x128xf32>
    %c3 = arith.constant 3 : index
    %c0_11 = arith.constant 0 : index
    %c0_12 = arith.constant 0 : index
    %17 = vector.load %arg2[%c3, %c0_11, %c0_12] : memref<5x128x256xf32, #tpu.memory_space<vmem>>, vector<1x128x256xf32>
    %18 = vector.shape_cast %17 : vector<1x128x256xf32> to vector<128x256xf32>
    %cst_13 = arith.constant dense<0.000000e+00> : vector<28x256xf32>
    %19 = tpu.matmul %16, %18, %cst_13 {dimension_numbers = #tpu.dot_dimension_numbers<[1], [0], [0], [1], [0, 0, 1, 1], [], []>} : vector<28x128xf32>, vector<128x256xf32>, vector<28x256xf32> -> vector<28x256xf32>
    %20 = arith.addf %15, %19 : vector<28x256xf32>
    %21 = vector.extract_strided_slice %1 {offsets = [4, 0], sizes = [28, 128], strides = [1, 1]} : vector<32x128xf32> to vector<28x128xf32>
    %c4 = arith.constant 4 : index
    %c0_14 = arith.constant 0 : index
    %c0_15 = arith.constant 0 : index
    %22 = vector.load %arg2[%c4, %c0_14, %c0_15] : memref<5x128x256xf32, #tpu.memory_space<vmem>>, vector<1x128x256xf32>
    %23 = vector.shape_cast %22 : vector<1x128x256xf32> to vector<128x256xf32>
    %cst_16 = arith.constant dense<0.000000e+00> : vector<28x256xf32>
    %24 = tpu.matmul %21, %23, %cst_16 {dimension_numbers = #tpu.dot_dimension_numbers<[1], [0], [0], [1], [0, 0, 1, 1], [], []>} : vector<28x128xf32>, vector<128x256xf32>, vector<28x256xf32> -> vector<28x256xf32>
    %25 = arith.addf %20, %24 : vector<28x256xf32>
    %c0_17 = arith.constant 0 : index
    %c0_18 = arith.constant 0 : index
    %26 = vector.load %arg3[%c0_17, %c0_18] : memref<1x256xf32, #tpu.memory_space<vmem>>, vector<1x256xf32>
    %27 = vector.broadcast %26 : vector<1x256xf32> to vector<28x256xf32>
    %28 = arith.addf %25, %27 : vector<28x256xf32>
    %cst_19 = arith.constant 0.000000e+00 : f32
    %29 = vector.broadcast %cst_19 : f32 to vector<28x256xf32>
    %30 = arith.maximumf %28, %29 : vector<28x256xf32>
    %c0_20 = arith.constant 0 : index
    %c0_21 = arith.constant 0 : index
    %c0_22 = arith.constant 0 : index
    %31 = vector.load %arg4[%c0_20, %c0_21, %c0_22] : memref<2x14x28xf32, #tpu.memory_space<vmem>>, vector<1x14x28xf32>
    %32 = vector.shape_cast %31 : vector<1x14x28xf32> to vector<14x28xf32>
    %cst_23 = arith.constant dense<0.000000e+00> : vector<14x256xf32>
    %33 = tpu.matmul %32, %30, %cst_23 {dimension_numbers = #tpu.dot_dimension_numbers<[1], [0], [0], [1], [0, 0, 1, 1], [], []>} : vector<14x28xf32>, vector<28x256xf32>, vector<14x256xf32> -> vector<14x256xf32>
    %c1_24 = arith.constant 1 : index
    %c0_25 = arith.constant 0 : index
    %c0_26 = arith.constant 0 : index
    %34 = vector.load %arg4[%c1_24, %c0_25, %c0_26] : memref<2x14x28xf32, #tpu.memory_space<vmem>>, vector<1x14x28xf32>
    %35 = vector.shape_cast %34 : vector<1x14x28xf32> to vector<14x28xf32>
    %cst_27 = arith.constant dense<0.000000e+00> : vector<14x256xf32>
    %36 = tpu.matmul %35, %30, %cst_27 {dimension_numbers = #tpu.dot_dimension_numbers<[1], [0], [0], [1], [0, 0, 1, 1], [], []>} : vector<14x28xf32>, vector<28x256xf32>, vector<14x256xf32> -> vector<14x256xf32>
    %37 = arith.maximumf %33, %36 : vector<14x256xf32>
    %c0_28 = arith.constant 0 : index
    %c0_29 = arith.constant 0 : index
    %c0_30 = arith.constant 0 : index
    %38 = vector.load %arg5[%c0_28, %c0_29, %c0_30] : memref<2x256x128xf32, #tpu.memory_space<vmem>>, vector<1x256x128xf32>
    %39 = vector.shape_cast %38 : vector<1x256x128xf32> to vector<256x128xf32>
    %cst_31 = arith.constant dense<0.000000e+00> : vector<14x128xf32>
    %40 = tpu.matmul %37, %39, %cst_31 {dimension_numbers = #tpu.dot_dimension_numbers<[1], [0], [0], [1], [0, 0, 1, 1], [], []>} : vector<14x256xf32>, vector<256x128xf32>, vector<14x128xf32> -> vector<14x128xf32>
    %c1_32 = arith.constant 1 : index
    %c0_33 = arith.constant 0 : index
    %c0_34 = arith.constant 0 : index
    %41 = vector.load %arg5[%c1_32, %c0_33, %c0_34] : memref<2x256x128xf32, #tpu.memory_space<vmem>>, vector<1x256x128xf32>
    %42 = vector.shape_cast %41 : vector<1x256x128xf32> to vector<256x128xf32>
    %cst_35 = arith.constant dense<0.000000e+00> : vector<14x128xf32>
    %43 = tpu.matmul %37, %42, %cst_35 {dimension_numbers = #tpu.dot_dimension_numbers<[1], [0], [0], [1], [0, 0, 1, 1], [], []>} : vector<14x256xf32>, vector<256x128xf32>, vector<14x128xf32> -> vector<14x128xf32>
    %44 = arith.maximumf %40, %43 : vector<14x128xf32>
    %45 = vector.extract_strided_slice %44 {offsets = [0, 0], sizes = [10, 128], strides = [1, 1]} : vector<14x128xf32> to vector<10x128xf32>
    %c0_36 = arith.constant 0 : index
    %c0_37 = arith.constant 0 : index
    %c0_38 = arith.constant 0 : index
    %46 = vector.load %arg6[%c0_36, %c0_37, %c0_38] : memref<5x128x256xf32, #tpu.memory_space<vmem>>, vector<1x128x256xf32>
    %47 = vector.shape_cast %46 : vector<1x128x256xf32> to vector<128x256xf32>
    %cst_39 = arith.constant dense<0.000000e+00> : vector<10x256xf32>
    %48 = tpu.matmul %45, %47, %cst_39 {dimension_numbers = #tpu.dot_dimension_numbers<[1], [0], [0], [1], [0, 0, 1, 1], [], []>} : vector<10x128xf32>, vector<128x256xf32>, vector<10x256xf32> -> vector<10x256xf32>
    %49 = vector.extract_strided_slice %44 {offsets = [1, 0], sizes = [10, 128], strides = [1, 1]} : vector<14x128xf32> to vector<10x128xf32>
    %c1_40 = arith.constant 1 : index
    %c0_41 = arith.constant 0 : index
    %c0_42 = arith.constant 0 : index
    %50 = vector.load %arg6[%c1_40, %c0_41, %c0_42] : memref<5x128x256xf32, #tpu.memory_space<vmem>>, vector<1x128x256xf32>
    %51 = vector.shape_cast %50 : vector<1x128x256xf32> to vector<128x256xf32>
    %cst_43 = arith.constant dense<0.000000e+00> : vector<10x256xf32>
    %52 = tpu.matmul %49, %51, %cst_43 {dimension_numbers = #tpu.dot_dimension_numbers<[1], [0], [0], [1], [0, 0, 1, 1], [], []>} : vector<10x128xf32>, vector<128x256xf32>, vector<10x256xf32> -> vector<10x256xf32>
    %53 = arith.addf %48, %52 : vector<10x256xf32>
    %54 = vector.extract_strided_slice %44 {offsets = [2, 0], sizes = [10, 128], strides = [1, 1]} : vector<14x128xf32> to vector<10x128xf32>
    %c2_44 = arith.constant 2 : index
    %c0_45 = arith.constant 0 : index
    %c0_46 = arith.constant 0 : index
    %55 = vector.load %arg6[%c2_44, %c0_45, %c0_46] : memref<5x128x256xf32, #tpu.memory_space<vmem>>, vector<1x128x256xf32>
    %56 = vector.shape_cast %55 : vector<1x128x256xf32> to vector<128x256xf32>
    %cst_47 = arith.constant dense<0.000000e+00> : vector<10x256xf32>
    %57 = tpu.matmul %54, %56, %cst_47 {dimension_numbers = #tpu.dot_dimension_numbers<[1], [0], [0], [1], [0, 0, 1, 1], [], []>} : vector<10x128xf32>, vector<128x256xf32>, vector<10x256xf32> -> vector<10x256xf32>
    %58 = arith.addf %53, %57 : vector<10x256xf32>
    %59 = vector.extract_strided_slice %44 {offsets = [3, 0], sizes = [10, 128], strides = [1, 1]} : vector<14x128xf32> to vector<10x128xf32>
    %c3_48 = arith.constant 3 : index
    %c0_49 = arith.constant 0 : index
    %c0_50 = arith.constant 0 : index
    %60 = vector.load %arg6[%c3_48, %c0_49, %c0_50] : memref<5x128x256xf32, #tpu.memory_space<vmem>>, vector<1x128x256xf32>
    %61 = vector.shape_cast %60 : vector<1x128x256xf32> to vector<128x256xf32>
    %cst_51 = arith.constant dense<0.000000e+00> : vector<10x256xf32>
    %62 = tpu.matmul %59, %61, %cst_51 {dimension_numbers = #tpu.dot_dimension_numbers<[1], [0], [0], [1], [0, 0, 1, 1], [], []>} : vector<10x128xf32>, vector<128x256xf32>, vector<10x256xf32> -> vector<10x256xf32>
    %63 = arith.addf %58, %62 : vector<10x256xf32>
    %64 = vector.extract_strided_slice %44 {offsets = [4, 0], sizes = [10, 128], strides = [1, 1]} : vector<14x128xf32> to vector<10x128xf32>
    %c4_52 = arith.constant 4 : index
    %c0_53 = arith.constant 0 : index
    %c0_54 = arith.constant 0 : index
    %65 = vector.load %arg6[%c4_52, %c0_53, %c0_54] : memref<5x128x256xf32, #tpu.memory_space<vmem>>, vector<1x128x256xf32>
    %66 = vector.shape_cast %65 : vector<1x128x256xf32> to vector<128x256xf32>
    %cst_55 = arith.constant dense<0.000000e+00> : vector<10x256xf32>
    %67 = tpu.matmul %64, %66, %cst_55 {dimension_numbers = #tpu.dot_dimension_numbers<[1], [0], [0], [1], [0, 0, 1, 1], [], []>} : vector<10x128xf32>, vector<128x256xf32>, vector<10x256xf32> -> vector<10x256xf32>
    %68 = arith.addf %63, %67 : vector<10x256xf32>
    %c0_56 = arith.constant 0 : index
    %c0_57 = arith.constant 0 : index
    %69 = vector.load %arg7[%c0_56, %c0_57] : memref<1x256xf32, #tpu.memory_space<vmem>>, vector<1x256xf32>
    %70 = vector.broadcast %69 : vector<1x256xf32> to vector<10x256xf32>
    %71 = arith.addf %68, %70 : vector<10x256xf32>
    %cst_58 = arith.constant 0.000000e+00 : f32
    %72 = vector.broadcast %cst_58 : f32 to vector<10x256xf32>
    %73 = arith.maximumf %71, %72 : vector<10x256xf32>
    %c0_59 = arith.constant 0 : index
    %c0_60 = arith.constant 0 : index
    %c0_61 = arith.constant 0 : index
    %74 = vector.load %arg8[%c0_59, %c0_60, %c0_61] : memref<2x5x10xf32, #tpu.memory_space<vmem>>, vector<1x5x10xf32>
    %75 = vector.shape_cast %74 : vector<1x5x10xf32> to vector<5x10xf32>
    %cst_62 = arith.constant dense<0.000000e+00> : vector<5x256xf32>
    %76 = tpu.matmul %75, %73, %cst_62 {dimension_numbers = #tpu.dot_dimension_numbers<[1], [0], [0], [1], [0, 0, 1, 1], [], []>} : vector<5x10xf32>, vector<10x256xf32>, vector<5x256xf32> -> vector<5x256xf32>
    %c1_63 = arith.constant 1 : index
    %c0_64 = arith.constant 0 : index
    %c0_65 = arith.constant 0 : index
    %77 = vector.load %arg8[%c1_63, %c0_64, %c0_65] : memref<2x5x10xf32, #tpu.memory_space<vmem>>, vector<1x5x10xf32>
    %78 = vector.shape_cast %77 : vector<1x5x10xf32> to vector<5x10xf32>
    %cst_66 = arith.constant dense<0.000000e+00> : vector<5x256xf32>
    %79 = tpu.matmul %78, %73, %cst_66 {dimension_numbers = #tpu.dot_dimension_numbers<[1], [0], [0], [1], [0, 0, 1, 1], [], []>} : vector<5x10xf32>, vector<10x256xf32>, vector<5x256xf32> -> vector<5x256xf32>
    %80 = arith.maximumf %76, %79 : vector<5x256xf32>
    %c0_67 = arith.constant 0 : index
    %c0_68 = arith.constant 0 : index
    %c0_69 = arith.constant 0 : index
    %81 = vector.load %arg9[%c0_67, %c0_68, %c0_69] : memref<2x256x128xf32, #tpu.memory_space<vmem>>, vector<1x256x128xf32>
    %82 = vector.shape_cast %81 : vector<1x256x128xf32> to vector<256x128xf32>
    %cst_70 = arith.constant dense<0.000000e+00> : vector<5x128xf32>
    %83 = tpu.matmul %80, %82, %cst_70 {dimension_numbers = #tpu.dot_dimension_numbers<[1], [0], [0], [1], [0, 0, 1, 1], [], []>} : vector<5x256xf32>, vector<256x128xf32>, vector<5x128xf32> -> vector<5x128xf32>
    %c1_71 = arith.constant 1 : index
    %c0_72 = arith.constant 0 : index
    %c0_73 = arith.constant 0 : index
    %84 = vector.load %arg9[%c1_71, %c0_72, %c0_73] : memref<2x256x128xf32, #tpu.memory_space<vmem>>, vector<1x256x128xf32>
    %85 = vector.shape_cast %84 : vector<1x256x128xf32> to vector<256x128xf32>
    %cst_74 = arith.constant dense<0.000000e+00> : vector<5x128xf32>
    %86 = tpu.matmul %80, %85, %cst_74 {dimension_numbers = #tpu.dot_dimension_numbers<[1], [0], [0], [1], [0, 0, 1, 1], [], []>} : vector<5x256xf32>, vector<256x128xf32>, vector<5x128xf32> -> vector<5x128xf32>
    %87 = arith.maximumf %83, %86 : vector<5x128xf32>
    %88 = vector.extract_strided_slice %87 {offsets = [0, 0], sizes = [1, 128], strides = [1, 1]} : vector<5x128xf32> to vector<1x128xf32>
    %c0_75 = arith.constant 0 : index
    %c0_76 = arith.constant 0 : index
    %c0_77 = arith.constant 0 : index
    %89 = vector.load %arg10[%c0_75, %c0_76, %c0_77] : memref<5x128x128xf32, #tpu.memory_space<vmem>>, vector<1x128x128xf32>
    %90 = vector.shape_cast %89 : vector<1x128x128xf32> to vector<128x128xf32>
    %cst_78 = arith.constant dense<0.000000e+00> : vector<1x128xf32>
    %91 = tpu.matmul %88, %90, %cst_78 {dimension_numbers = #tpu.dot_dimension_numbers<[1], [0], [0], [1], [0, 0, 1, 1], [], []>} : vector<1x128xf32>, vector<128x128xf32>, vector<1x128xf32> -> vector<1x128xf32>
    %92 = vector.extract_strided_slice %87 {offsets = [1, 0], sizes = [1, 128], strides = [1, 1]} : vector<5x128xf32> to vector<1x128xf32>
    %c1_79 = arith.constant 1 : index
    %c0_80 = arith.constant 0 : index
    %c0_81 = arith.constant 0 : index
    %93 = vector.load %arg10[%c1_79, %c0_80, %c0_81] : memref<5x128x128xf32, #tpu.memory_space<vmem>>, vector<1x128x128xf32>
    %94 = vector.shape_cast %93 : vector<1x128x128xf32> to vector<128x128xf32>
    %cst_82 = arith.constant dense<0.000000e+00> : vector<1x128xf32>
    %95 = tpu.matmul %92, %94, %cst_82 {dimension_numbers = #tpu.dot_dimension_numbers<[1], [0], [0], [1], [0, 0, 1, 1], [], []>} : vector<1x128xf32>, vector<128x128xf32>, vector<1x128xf32> -> vector<1x128xf32>
    %96 = arith.addf %91, %95 : vector<1x128xf32>
    %97 = vector.extract_strided_slice %87 {offsets = [2, 0], sizes = [1, 128], strides = [1, 1]} : vector<5x128xf32> to vector<1x128xf32>
    %c2_83 = arith.constant 2 : index
    %c0_84 = arith.constant 0 : index
    %c0_85 = arith.constant 0 : index
    %98 = vector.load %arg10[%c2_83, %c0_84, %c0_85] : memref<5x128x128xf32, #tpu.memory_space<vmem>>, vector<1x128x128xf32>
    %99 = vector.shape_cast %98 : vector<1x128x128xf32> to vector<128x128xf32>
    %cst_86 = arith.constant dense<0.000000e+00> : vector<1x128xf32>
    %100 = tpu.matmul %97, %99, %cst_86 {dimension_numbers = #tpu.dot_dimension_numbers<[1], [0], [0], [1], [0, 0, 1, 1], [], []>} : vector<1x128xf32>, vector<128x128xf32>, vector<1x128xf32> -> vector<1x128xf32>
    %101 = arith.addf %96, %100 : vector<1x128xf32>
    %102 = vector.extract_strided_slice %87 {offsets = [3, 0], sizes = [1, 128], strides = [1, 1]} : vector<5x128xf32> to vector<1x128xf32>
    %c3_87 = arith.constant 3 : index
    %c0_88 = arith.constant 0 : index
    %c0_89 = arith.constant 0 : index
    %103 = vector.load %arg10[%c3_87, %c0_88, %c0_89] : memref<5x128x128xf32, #tpu.memory_space<vmem>>, vector<1x128x128xf32>
    %104 = vector.shape_cast %103 : vector<1x128x128xf32> to vector<128x128xf32>
    %cst_90 = arith.constant dense<0.000000e+00> : vector<1x128xf32>
    %105 = tpu.matmul %102, %104, %cst_90 {dimension_numbers = #tpu.dot_dimension_numbers<[1], [0], [0], [1], [0, 0, 1, 1], [], []>} : vector<1x128xf32>, vector<128x128xf32>, vector<1x128xf32> -> vector<1x128xf32>
    %106 = arith.addf %101, %105 : vector<1x128xf32>
    %107 = vector.extract_strided_slice %87 {offsets = [4, 0], sizes = [1, 128], strides = [1, 1]} : vector<5x128xf32> to vector<1x128xf32>
    %c4_91 = arith.constant 4 : index
    %c0_92 = arith.constant 0 : index
    %c0_93 = arith.constant 0 : index
    %108 = vector.load %arg10[%c4_91, %c0_92, %c0_93] : memref<5x128x128xf32, #tpu.memory_space<vmem>>, vector<1x128x128xf32>
    %109 = vector.shape_cast %108 : vector<1x128x128xf32> to vector<128x128xf32>
    %cst_94 = arith.constant dense<0.000000e+00> : vector<1x128xf32>
    %110 = tpu.matmul %107, %109, %cst_94 {dimension_numbers = #tpu.dot_dimension_numbers<[1], [0], [0], [1], [0, 0, 1, 1], [], []>} : vector<1x128xf32>, vector<128x128xf32>, vector<1x128xf32> -> vector<1x128xf32>
    %111 = arith.addf %106, %110 : vector<1x128xf32>
    %c0_95 = arith.constant 0 : index
    %c0_96 = arith.constant 0 : index
    %112 = vector.load %arg11[%c0_95, %c0_96] : memref<1x128xf32, #tpu.memory_space<vmem>>, vector<1x128xf32>
    %113 = arith.addf %111, %112 : vector<1x128xf32>
    %cst_97 = arith.constant 0.000000e+00 : f32
    %114 = vector.broadcast %cst_97 : f32 to vector<1x128xf32>
    %115 = arith.maximumf %113, %114 : vector<1x128xf32>
    %c0_98 = arith.constant 0 : index
    %c0_99 = arith.constant 0 : index
    %116 = vector.load %arg12[%c0_98, %c0_99] : memref<128x128xf32, #tpu.memory_space<vmem>>, vector<128x128xf32>
    %cst_100 = arith.constant dense<0.000000e+00> : vector<1x128xf32>
    %117 = tpu.matmul %115, %116, %cst_100 {dimension_numbers = #tpu.dot_dimension_numbers<[1], [0], [0], [1], [0, 0, 1, 1], [], []>} : vector<1x128xf32>, vector<128x128xf32>, vector<1x128xf32> -> vector<1x128xf32>
    %c0_101 = arith.constant 0 : index
    %c0_102 = arith.constant 0 : index
    %118 = vector.load %arg13[%c0_101, %c0_102] : memref<1x128xf32, #tpu.memory_space<vmem>>, vector<1x128xf32>
    %119 = arith.addf %117, %118 : vector<1x128xf32>
    %cst_103 = arith.constant 0.000000e+00 : f32
    %120 = vector.broadcast %cst_103 : f32 to vector<1x128xf32>
    %121 = arith.maximumf %119, %120 : vector<1x128xf32>
    %c0_104 = arith.constant 0 : index
    %c0_105 = arith.constant 0 : index
    %122 = vector.load %arg14[%c0_104, %c0_105] : memref<128x128xf32, #tpu.memory_space<vmem>>, vector<128x128xf32>
    %cst_106 = arith.constant dense<0.000000e+00> : vector<1x128xf32>
    %123 = tpu.matmul %121, %122, %cst_106 {dimension_numbers = #tpu.dot_dimension_numbers<[1], [0], [0], [1], [0, 0, 1, 1], [], []>} : vector<1x128xf32>, vector<128x128xf32>, vector<1x128xf32> -> vector<1x128xf32>
    %c0_107 = arith.constant 0 : index
    %c0_108 = arith.constant 0 : index
    %124 = vector.load %arg15[%c0_107, %c0_108] : memref<1x128xf32, #tpu.memory_space<vmem>>, vector<1x128xf32>
    %125 = arith.addf %123, %124 : vector<1x128xf32>
    %126 = arith.index_cast %arg0 : i32 to index
    %c0_109 = arith.constant 0 : index
    %127 = vector.load %arg16[%126, %c0_109] : memref<2x128xf32, #tpu.memory_space<vmem>>, vector<1x128xf32>
    tpu.vector_store %arg16[%126, %c0_109], %125 {strides = array<i32>} : memref<2x128xf32, #tpu.memory_space<vmem>>, vector<1x128xf32>,
    return
  }
  func.func @transform_0(%arg0: i32) -> (i32, i32, i32) {
    %c0_i32 = arith.constant 0 : i32
    %c0_i32_0 = arith.constant 0 : i32
    %c0_i32_1 = arith.constant 0 : i32
    return %arg0, %c0_i32, %c0_i32_0 : i32, i32, i32
  }
  func.func @transform_1(%arg0: i32) -> (i32, i32, i32) {
    %c0_i32 = arith.constant 0 : i32
    %c0_i32_0 = arith.constant 0 : i32
    %c0_i32_1 = arith.constant 0 : i32
    %c0_i32_2 = arith.constant 0 : i32
    return %c0_i32, %c0_i32_0, %c0_i32_1 : i32, i32, i32
  }
  func.func @transform_2(%arg0: i32) -> (i32, i32) {
    %c0_i32 = arith.constant 0 : i32
    %c0_i32_0 = arith.constant 0 : i32
    %c0_i32_1 = arith.constant 0 : i32
    return %c0_i32, %c0_i32_0 : i32, i32
  }
  func.func @transform_3(%arg0: i32) -> (i32, i32, i32) {
    %c0_i32 = arith.constant 0 : i32
    %c0_i32_0 = arith.constant 0 : i32
    %c0_i32_1 = arith.constant 0 : i32
    %c0_i32_2 = arith.constant 0 : i32
    return %c0_i32, %c0_i32_0, %c0_i32_1 : i32, i32, i32
  }
  func.func @transform_4(%arg0: i32) -> (i32, i32, i32) {
    %c0_i32 = arith.constant 0 : i32
    %c0_i32_0 = arith.constant 0 : i32
    %c0_i32_1 = arith.constant 0 : i32
    %c0_i32_2 = arith.constant 0 : i32
    return %c0_i32, %c0_i32_0, %c0_i32_1 : i32, i32, i32
  }
  func.func @transform_5(%arg0: i32) -> (i32, i32, i32) {
    %c0_i32 = arith.constant 0 : i32
    %c0_i32_0 = arith.constant 0 : i32
    %c0_i32_1 = arith.constant 0 : i32
    %c0_i32_2 = arith.constant 0 : i32
    return %c0_i32, %c0_i32_0, %c0_i32_1 : i32, i32, i32
  }
  func.func @transform_6(%arg0: i32) -> (i32, i32) {
    %c0_i32 = arith.constant 0 : i32
    %c0_i32_0 = arith.constant 0 : i32
    %c0_i32_1 = arith.constant 0 : i32
    return %c0_i32, %c0_i32_0 : i32, i32
  }
  func.func @transform_7(%arg0: i32) -> (i32, i32, i32) {
    %c0_i32 = arith.constant 0 : i32
    %c0_i32_0 = arith.constant 0 : i32
    %c0_i32_1 = arith.constant 0 : i32
    %c0_i32_2 = arith.constant 0 : i32
    return %c0_i32, %c0_i32_0, %c0_i32_1 : i32, i32, i32
  }
  func.func @transform_8(%arg0: i32) -> (i32, i32, i32) {
    %c0_i32 = arith.constant 0 : i32
    %c0_i32_0 = arith.constant 0 : i32
    %c0_i32_1 = arith.constant 0 : i32
    %c0_i32_2 = arith.constant 0 : i32
    return %c0_i32, %c0_i32_0, %c0_i32_1 : i32, i32, i32
  }
  func.func @transform_9(%arg0: i32) -> (i32, i32, i32) {
    %c0_i32 = arith.constant 0 : i32
    %c0_i32_0 = arith.constant 0 : i32
    %c0_i32_1 = arith.constant 0 : i32
    %c0_i32_2 = arith.constant 0 : i32
    return %c0_i32, %c0_i32_0, %c0_i32_1 : i32, i32, i32
  }
  func.func @transform_10(%arg0: i32) -> (i32, i32) {
    %c0_i32 = arith.constant 0 : i32
    %c0_i32_0 = arith.constant 0 : i32
    %c0_i32_1 = arith.constant 0 : i32
    return %c0_i32, %c0_i32_0 : i32, i32
  }
  func.func @transform_11(%arg0: i32) -> (i32, i32) {
    %c0_i32 = arith.constant 0 : i32
    %c0_i32_0 = arith.constant 0 : i32
    %c0_i32_1 = arith.constant 0 : i32
    return %c0_i32, %c0_i32_0 : i32, i32
  }
  func.func @transform_12(%arg0: i32) -> (i32, i32) {
    %c0_i32 = arith.constant 0 : i32
    %c0_i32_0 = arith.constant 0 : i32
    %c0_i32_1 = arith.constant 0 : i32
    return %c0_i32, %c0_i32_0 : i32, i32
  }
  func.func @transform_13(%arg0: i32) -> (i32, i32) {
    %c0_i32 = arith.constant 0 : i32
    %c0_i32_0 = arith.constant 0 : i32
    %c0_i32_1 = arith.constant 0 : i32
    return %c0_i32, %c0_i32_0 : i32, i32
  }
  func.func @transform_14(%arg0: i32) -> (i32, i32) {
    %c0_i32 = arith.constant 0 : i32
    %c0_i32_0 = arith.constant 0 : i32
    %c0_i32_1 = arith.constant 0 : i32
    return %c0_i32, %c0_i32_0 : i32, i32
  }
  func.func @transform_15(%arg0: i32) -> (i32, i32) {
    %c0_i32 = arith.constant 0 : i32
    %c0_i32_0 = arith.constant 0 : i32
    %c0_i32_1 = arith.constant 0 : i32
    return %c0_i32, %c0_i32_0 : i32, i32
  }
}

</mosaic_0001>

<llo_original>
// kernel: net_forward.1
$region0: #{net_forward.1}
  #allocation0 [shape = 'u32[]', space=smem, size = 0x4, offset = 0x4, fixed_abs, tag = 'smem constant byte address 0x4 - core index']
  #allocation1 [shape = 'u32[72,128]{1,0:T(1,128)}', space=vmem, size = 0x9000, scoped, tag = 'internal scratch']
  %s0 = inlined_call_operand.vmem [shape: f32[2,32,128], index: 0, kind: input, shape index: {}]
  %s1 = inlined_call_operand.hbm [shape: f32[5,128,256], index: 1, kind: input, shape index: {}]
  %s2 = inlined_call_operand.vmem [shape: f32[1,256], index: 2, kind: input, shape index: {}]
  %s3 = inlined_call_operand.vmem [shape: f32[2,14,28], index: 3, kind: input, shape index: {}]
  %s4 = inlined_call_operand.hbm [shape: f32[2,256,128], index: 4, kind: input, shape index: {}]
  %s5 = inlined_call_operand.hbm [shape: f32[5,128,256], index: 5, kind: input, shape index: {}]
  %s6 = inlined_call_operand.vmem [shape: f32[1,256], index: 6, kind: input, shape index: {}]
  %s7 = inlined_call_operand.vmem [shape: f32[2,5,10], index: 7, kind: input, shape index: {}]
  %s8 = inlined_call_operand.hbm [shape: f32[2,256,128], index: 8, kind: input, shape index: {}]
  %s9 = inlined_call_operand.vmem [shape: f32[5,128,128], index: 9, kind: input, shape index: {}]
  %s10 = inlined_call_operand.vmem [shape: f32[1,128], index: 10, kind: input, shape index: {}]
  %s11 = inlined_call_operand.vmem [shape: f32[128,128], index: 11, kind: input, shape index: {}]
  %s12 = inlined_call_operand.vmem [shape: f32[1,128], index: 12, kind: input, shape index: {}]
  %s13 = inlined_call_operand.hbm [shape: f32[128,128], index: 13, kind: input, shape index: {}]
  %s14 = inlined_call_operand.vmem [shape: f32[1,128], index: 14, kind: input, shape index: {}]
  %s15 = inlined_call_operand.hbm [shape: f32[2,128], index: 15, kind: output, shape index: {}]
  %s16 = sld [smem:[#allocation0]]
  $region113: #{net_forward.1} parent=0
    _
  %s18 = ssub.s32 1, %s16
  %s19 = scalar_select 0, %s18, %s16
  $region1: #{net_forward.1} parent=0
    #allocation2 [shape = 'u8[655360]{0}', space=vmem, size = 0xa0000, scoped, tag = 'input window, operand 1, single buffered']
    #allocation3 [shape = 's32[2]{0}', space=sflag, size = 0x8, scoped, tag = 'scoped memory for net_forward.1']
    #allocation4 [shape = 's32[2]{0}', space=sflag, size = 0x8, scoped, tag = 'scoped memory for net_forward.1']
    #allocation5 [shape = 'u8[262144]{0}', space=vmem, size = 0x40000, scoped, tag = 'input window, operand 4, single buffered']
    #allocation6 [shape = 's32[1]{0}', space=sflag, size = 0x4, scoped, tag = 'scoped memory for net_forward.1']
    #allocation7 [shape = 'u8[655360]{0}', space=vmem, size = 0xa0000, scoped, tag = 'input window, operand 5, single buffered']
    #allocation8 [shape = 'u8[262144]{0}', space=vmem, size = 0x40000, scoped, tag = 'input window, operand 8, single buffered']
    #allocation9 [shape = 's32[1]{0}', space=sflag, size = 0x4, scoped, tag = 'scoped memory for net_forward.1']
    #allocation10 [shape = 'u8[65536]{0}', space=vmem, size = 0x10000, scoped, tag = 'input window, operand 13, single buffered']
    #allocation11 [shape = 'u8[1024]{0}', space=vmem, size = 0x400, scoped, tag = 'output window, operand 0, single buffered']
    %20 = vsyncpa [#allocation3], 0
    %21 = vsyncpa [#allocation6], 0
    %22 = vsyncpa [#allocation9], 0
    %23 = vsyncpa [#allocation4], 0
    loop: start=0, step=1, limit=4
    $region2: #{net_forward.1} parent=1 // loop_pre_header
      _
    $region3: #{net_forward.1} parent=1 // loop_header
      %s25 = sphi 0, %s29
      %p26 = scmp.ge.s32.totalorder %s25, 4
      %s35 = sphi 0, %s37
      %s38 = sphi 0, %s35
      %s39 = sphi 0, %s38
      %s55 = sphi 0, %s39
      %s59 = sphi 0, %s59
      %s61 = sphi 0, %s59
      %s62 = sphi 0, %s61
      %s76 = sphi 0, %s62
      %s80 = sphi 0, %s80
      %s82 = sphi 0, %s80
      %s83 = sphi 0, %s82
      %s97 = sphi 0, %s83
      %s101 = sphi 0, %s101
      %s103 = sphi 0, %s101
      %s104 = sphi 0, %s103
      %s118 = sphi 0, %s104
      %s122 = sphi 0, %s122
      %s124 = sphi 0, %s122
      %s125 = sphi 0, %s124
      %s139 = sphi 0, %s125
      %s143 = sphi 0, %s143
      %s145 = sphi 0, %s143
      %s146 = sphi 0, %s145
      %s160 = sphi 0, %s146
      %s164 = sphi 0, %s164
      %s166 = sphi 0, %s164
      %s167 = sphi 0, %s166
      %s181 = sphi 0, %s167
      %s185 = sphi 0, %s185
      %s187 = sphi 0, %s185
      %s188 = sphi 0, %s187
      %s202 = sphi 0, %s188
      %s206 = sphi 0, %s206
      %s208 = sphi 0, %s206
      %s209 = sphi 0, %s208
      %s223 = sphi 0, %s209
      %s227 = sphi 0, %s227
      %s229 = sphi 0, %s227
      %s230 = sphi 0, %s229
      %s244 = sphi 0, %s230
      %s248 = sphi 0, %s248
      %s250 = sphi 0, %s248
      %s251 = sphi 0, %s250
      %s265 = sphi 0, %s251
      %s269 = sphi 0, %s269
      %s271 = sphi 0, %s269
      %s272 = sphi 0, %s271
      %s286 = sphi 0, %s272
      %s290 = sphi 0, %s290
      %s292 = sphi 0, %s290
      %s293 = sphi 0, %s292
      %s307 = sphi 0, %s293
      %s311 = sphi 0, %s311
      %s313 = sphi 0, %s311
      %s314 = sphi 0, %s313
      %s328 = sphi 0, %s314
      %s332 = sphi 0, %s332
      %s334 = sphi 0, %s332
      %s335 = sphi 0, %s334
      %s349 = sphi 0, %s335
      %s353 = sphi 0, %s353
      %s355 = sphi 0, %s353
      %s356 = sphi 0, %s355
      %s370 = sphi 0, %s356
    $region4: #{net_forward.1} parent=1 // loop_header_branch
      %28 = sbr.rel (%p26) target = $region8
    $region5: #{net_forward.1} parent=1 // loop_body
      %s30 = ssub.s32 %s25, 1
      %s31 = ssub.s32 %s25, 2
      %s32 = sadd.s32 %s25, 1
      %s33 = ssub.s32 %s25, %s32
      %p34 = scmp.eq.s32.totalorder %s33, 0
      %s36 = sadd.s32 %s35, 1
      %s37 = scalar_select %p34, %s35, %s36
      %p40 = pneg %p34
      %p41 = scmp.eq.s32.totalorder %s25, 1
      %p42 = por %p40, %p41
      %p43 = scmp.ne.s32.totalorder %s35, %s38
      %p44 = scmp.eq.s32.totalorder %s25, 0
      %p45 = por %p43, %p44
      %p46 = scmp.ne.s32.totalorder %s35, %s38
      %p47 = scmp.eq.s32.totalorder %s30, 1
      %p48 = por %p46, %p47
      %p49 = scmp.ne.s32.totalorder %s38, %s39
      %p50 = scmp.eq.s32.totalorder %s30, 0
      %p51 = por %p49, %p50
      %p52 = scmp.ne.s32.totalorder %s38, %s39
      %p53 = scmp.eq.s32.totalorder %s31, 1
      %p54 = por %p52, %p53
      %p56 = scmp.ne.s32.totalorder %s39, %s55
      %p57 = scmp.eq.s32.totalorder %s31, 0
      %p58 = por %p56, %p57
      %s60 = sadd.s32 %s59, 1
      %p63 = scmp.eq.s32.totalorder %s25, 1
      %p64 = scmp.ne.s32.totalorder %s59, %s61
      %p65 = scmp.eq.s32.totalorder %s25, 0
      %p66 = por %p64, %p65
      %p67 = scmp.ne.s32.totalorder %s59, %s61
      %p68 = scmp.eq.s32.totalorder %s30, 1
      %p69 = por %p67, %p68
      %p70 = scmp.ne.s32.totalorder %s61, %s62
      %p71 = scmp.eq.s32.totalorder %s30, 0
      %p72 = por %p70, %p71
      %p73 = scmp.ne.s32.totalorder %s61, %s62
      %p74 = scmp.eq.s32.totalorder %s31, 1
      %p75 = por %p73, %p74
      %p77 = scmp.ne.s32.totalorder %s62, %s76
      %p78 = scmp.eq.s32.totalorder %s31, 0
      %p79 = por %p77, %p78
      %s81 = sadd.s32 %s80, 1
      %p84 = scmp.eq.s32.totalorder %s25, 1
      %p85 = scmp.ne.s32.totalorder %s80, %s82
      %p86 = scmp.eq.s32.totalorder %s25, 0
      %p87 = por %p85, %p86
      %p88 = scmp.ne.s32.totalorder %s80, %s82
      %p89 = scmp.eq.s32.totalorder %s30, 1
      %p90 = por %p88, %p89
      %p91 = scmp.ne.s32.totalorder %s82, %s83
      %p92 = scmp.eq.s32.totalorder %s30, 0
      %p93 = por %p91, %p92
      %p94 = scmp.ne.s32.totalorder %s82, %s83
      %p95 = scmp.eq.s32.totalorder %s31, 1
      %p96 = por %p94, %p95
      %p98 = scmp.ne.s32.totalorder %s83, %s97
      %p99 = scmp.eq.s32.totalorder %s31, 0
      %p100 = por %p98, %p99
      %s102 = sadd.s32 %s101, 1
      %p105 = scmp.eq.s32.totalorder %s25, 1
      %p106 = scmp.ne.s32.totalorder %s101, %s103
      %p107 = scmp.eq.s32.totalorder %s25, 0
      %p108 = por %p106, %p107
      %p109 = scmp.ne.s32.totalorder %s101, %s103
      %p110 = scmp.eq.s32.totalorder %s30, 1
      %p111 = por %p109, %p110
      %p112 = scmp.ne.s32.totalorder %s103, %s104
      %p113 = scmp.eq.s32.totalorder %s30, 0
      %p114 = por %p112, %p113
      %p115 = scmp.ne.s32.totalorder %s103, %s104
      %p116 = scmp.eq.s32.totalorder %s31, 1
      %p117 = por %p115, %p116
      %p119 = scmp.ne.s32.totalorder %s104, %s118
      %p120 = scmp.eq.s32.totalorder %s31, 0
      %p121 = por %p119, %p120
      %s123 = sadd.s32 %s122, 1
      %p126 = scmp.eq.s32.totalorder %s25, 1
      %p127 = scmp.ne.s32.totalorder %s122, %s124
      %p128 = scmp.eq.s32.totalorder %s25, 0
      %p129 = por %p127, %p128
      %p130 = scmp.ne.s32.totalorder %s122, %s124
      %p131 = scmp.eq.s32.totalorder %s30, 1
      %p132 = por %p130, %p131
      %p133 = scmp.ne.s32.totalorder %s124, %s125
      %p134 = scmp.eq.s32.totalorder %s30, 0
      %p135 = por %p133, %p134
      %p136 = scmp.ne.s32.totalorder %s124, %s125
      %p137 = scmp.eq.s32.totalorder %s31, 1
      %p138 = por %p136, %p137
      %p140 = scmp.ne.s32.totalorder %s125, %s139
      %p141 = scmp.eq.s32.totalorder %s31, 0
      %p142 = por %p140, %p141
      %s144 = sadd.s32 %s143, 1
      %p147 = scmp.eq.s32.totalorder %s25, 1
      %p148 = scmp.ne.s32.totalorder %s143, %s145
      %p149 = scmp.eq.s32.totalorder %s25, 0
      %p150 = por %p148, %p149
      %p151 = scmp.ne.s32.totalorder %s143, %s145
      %p152 = scmp.eq.s32.totalorder %s30, 1
      %p153 = por %p151, %p152
      %p154 = scmp.ne.s32.totalorder %s145, %s146
      %p155 = scmp.eq.s32.totalorder %s30, 0
      %p156 = por %p154, %p155
      %p157 = scmp.ne.s32.totalorder %s145, %s146
      %p158 = scmp.eq.s32.totalorder %s31, 1
      %p159 = por %p157, %p158
      %p161 = scmp.ne.s32.totalorder %s146, %s160
      %p162 = scmp.eq.s32.totalorder %s31, 0
      %p163 = por %p161, %p162
      %s165 = sadd.s32 %s164, 1
      %p168 = scmp.eq.s32.totalorder %s25, 1
      %p169 = scmp.ne.s32.totalorder %s164, %s166
      %p170 = scmp.eq.s32.totalorder %s25, 0
      %p171 = por %p169, %p170
      %p172 = scmp.ne.s32.totalorder %s164, %s166
      %p173 = scmp.eq.s32.totalorder %s30, 1
      %p174 = por %p172, %p173
      %p175 = scmp.ne.s32.totalorder %s166, %s167
      %p176 = scmp.eq.s32.totalorder %s30, 0
      %p177 = por %p175, %p176
      %p178 = scmp.ne.s32.totalorder %s166, %s167
      %p179 = scmp.eq.s32.totalorder %s31, 1
      %p180 = por %p178, %p179
      %p182 = scmp.ne.s32.totalorder %s167, %s181
      %p183 = scmp.eq.s32.totalorder %s31, 0
      %p184 = por %p182, %p183
      %s186 = sadd.s32 %s185, 1
      %p189 = scmp.eq.s32.totalorder %s25, 1
      %p190 = scmp.ne.s32.totalorder %s185, %s187
      %p191 = scmp.eq.s32.totalorder %s25, 0
      %p192 = por %p190, %p191
      %p193 = scmp.ne.s32.totalorder %s185, %s187
      %p194 = scmp.eq.s32.totalorder %s30, 1
      %p195 = por %p193, %p194
      %p196 = scmp.ne.s32.totalorder %s187, %s188
      %p197 = scmp.eq.s32.totalorder %s30, 0
      %p198 = por %p196, %p197
      %p199 = scmp.ne.s32.totalorder %s187, %s188
      %p200 = scmp.eq.s32.totalorder %s31, 1
      %p201 = por %p199, %p200
      %p203 = scmp.ne.s32.totalorder %s188, %s202
      %p204 = scmp.eq.s32.totalorder %s31, 0
      %p205 = por %p203, %p204
      %s207 = sadd.s32 %s206, 1
      %p210 = scmp.eq.s32.totalorder %s25, 1
      %p211 = scmp.ne.s32.totalorder %s206, %s208
      %p212 = scmp.eq.s32.totalorder %s25, 0
      %p213 = por %p211, %p212
      %p214 = scmp.ne.s32.totalorder %s206, %s208
      %p215 = scmp.eq.s32.totalorder %s30, 1
      %p216 = por %p214, %p215
      %p217 = scmp.ne.s32.totalorder %s208, %s209
      %p218 = scmp.eq.s32.totalorder %s30, 0
      %p219 = por %p217, %p218
      %p220 = scmp.ne.s32.totalorder %s208, %s209
      %p221 = scmp.eq.s32.totalorder %s31, 1
      %p222 = por %p220, %p221
      %p224 = scmp.ne.s32.totalorder %s209, %s223
      %p225 = scmp.eq.s32.totalorder %s31, 0
      %p226 = por %p224, %p225
      %s228 = sadd.s32 %s227, 1
      %p231 = scmp.eq.s32.totalorder %s25, 1
      %p232 = scmp.ne.s32.totalorder %s227, %s229
      %p233 = scmp.eq.s32.totalorder %s25, 0
      %p234 = por %p232, %p233
      %p235 = scmp.ne.s32.totalorder %s227, %s229
      %p236 = scmp.eq.s32.totalorder %s30, 1
      %p237 = por %p235, %p236
      %p238 = scmp.ne.s32.totalorder %s229, %s230
      %p239 = scmp.eq.s32.totalorder %s30, 0
      %p240 = por %p238, %p239
      %p241 = scmp.ne.s32.totalorder %s229, %s230
      %p242 = scmp.eq.s32.totalorder %s31, 1
      %p243 = por %p241, %p242
      %p245 = scmp.ne.s32.totalorder %s230, %s244
      %p246 = scmp.eq.s32.totalorder %s31, 0
      %p247 = por %p245, %p246
      %s249 = sadd.s32 %s248, 1
      %p252 = scmp.eq.s32.totalorder %s25, 1
      %p253 = scmp.ne.s32.totalorder %s248, %s250
      %p254 = scmp.eq.s32.totalorder %s25, 0
      %p255 = por %p253, %p254
      %p256 = scmp.ne.s32.totalorder %s248, %s250
      %p257 = scmp.eq.s32.totalorder %s30, 1
      %p258 = por %p256, %p257
      %p259 = scmp.ne.s32.totalorder %s250, %s251
      %p260 = scmp.eq.s32.totalorder %s30, 0
      %p261 = por %p259, %p260
      %p262 = scmp.ne.s32.totalorder %s250, %s251
      %p263 = scmp.eq.s32.totalorder %s31, 1
      %p264 = por %p262, %p263
      %p266 = scmp.ne.s32.totalorder %s251, %s265
      %p267 = scmp.eq.s32.totalorder %s31, 0
      %p268 = por %p266, %p267
      %s270 = sadd.s32 %s269, 1
      %p273 = scmp.eq.s32.totalorder %s25, 1
      %p274 = scmp.ne.s32.totalorder %s269, %s271
      %p275 = scmp.eq.s32.totalorder %s25, 0
      %p276 = por %p274, %p275
      %p277 = scmp.ne.s32.totalorder %s269, %s271
      %p278 = scmp.eq.s32.totalorder %s30, 1
      %p279 = por %p277, %p278
      %p280 = scmp.ne.s32.totalorder %s271, %s272
      %p281 = scmp.eq.s32.totalorder %s30, 0
      %p282 = por %p280, %p281
      %p283 = scmp.ne.s32.totalorder %s271, %s272
      %p284 = scmp.eq.s32.totalorder %s31, 1
      %p285 = por %p283, %p284
      %p287 = scmp.ne.s32.totalorder %s272, %s286
      %p288 = scmp.eq.s32.totalorder %s31, 0
      %p289 = por %p287, %p288
      %s291 = sadd.s32 %s290, 1
      %p294 = scmp.eq.s32.totalorder %s25, 1
      %p295 = scmp.ne.s32.totalorder %s290, %s292
      %p296 = scmp.eq.s32.totalorder %s25, 0
      %p297 = por %p295, %p296
      %p298 = scmp.ne.s32.totalorder %s290, %s292
      %p299 = scmp.eq.s32.totalorder %s30, 1
      %p300 = por %p298, %p299
      %p301 = scmp.ne.s32.totalorder %s292, %s293
      %p302 = scmp.eq.s32.totalorder %s30, 0
      %p303 = por %p301, %p302
      %p304 = scmp.ne.s32.totalorder %s292, %s293
      %p305 = scmp.eq.s32.totalorder %s31, 1
      %p306 = por %p304, %p305
      %p308 = scmp.ne.s32.totalorder %s293, %s307
      %p309 = scmp.eq.s32.totalorder %s31, 0
      %p310 = por %p308, %p309
      %s312 = sadd.s32 %s311, 1
      %p315 = scmp.eq.s32.totalorder %s25, 1
      %p316 = scmp.ne.s32.totalorder %s311, %s313
      %p317 = scmp.eq.s32.totalorder %s25, 0
      %p318 = por %p316, %p317
      %p319 = scmp.ne.s32.totalorder %s311, %s313
      %p320 = scmp.eq.s32.totalorder %s30, 1
      %p321 = por %p319, %p320
      %p322 = scmp.ne.s32.totalorder %s313, %s314
      %p323 = scmp.eq.s32.totalorder %s30, 0
      %p324 = por %p322, %p323
      %p325 = scmp.ne.s32.totalorder %s313, %s314
      %p326 = scmp.eq.s32.totalorder %s31, 1
      %p327 = por %p325, %p326
      %p329 = scmp.ne.s32.totalorder %s314, %s328
      %p330 = scmp.eq.s32.totalorder %s31, 0
      %p331 = por %p329, %p330
      %s333 = sadd.s32 %s332, 1
      %p336 = scmp.eq.s32.totalorder %s25, 1
      %p337 = scmp.ne.s32.totalorder %s332, %s334
      %p338 = scmp.eq.s32.totalorder %s25, 0
      %p339 = por %p337, %p338
      %p340 = scmp.ne.s32.totalorder %s332, %s334
      %p341 = scmp.eq.s32.totalorder %s30, 1
      %p342 = por %p340, %p341
      %p343 = scmp.ne.s32.totalorder %s334, %s335
      %p344 = scmp.eq.s32.totalorder %s30, 0
      %p345 = por %p343, %p344
      %p346 = scmp.ne.s32.totalorder %s334, %s335
      %p347 = scmp.eq.s32.totalorder %s31, 1
      %p348 = por %p346, %p347
      %p350 = scmp.ne.s32.totalorder %s335, %s349
      %p351 = scmp.eq.s32.totalorder %s31, 0
      %p352 = por %p350, %p351
      %s354 = sadd.s32 %s353, 1
      %p357 = scmp.eq.s32.totalorder %s25, 1
      %p358 = scmp.ne.s32.totalorder %s353, %s355
      %p359 = scmp.eq.s32.totalorder %s25, 0
      %p360 = por %p358, %p359
      %p361 = scmp.ne.s32.totalorder %s353, %s355
      %p362 = scmp.eq.s32.totalorder %s30, 1
      %p363 = por %p361, %p362
      %p364 = scmp.ne.s32.totalorder %s355, %s356
      %p365 = scmp.eq.s32.totalorder %s30, 0
      %p366 = por %p364, %p365
      %p367 = scmp.ne.s32.totalorder %s355, %s356
      %p368 = scmp.eq.s32.totalorder %s31, 1
      %p369 = por %p367, %p368
      %p371 = scmp.ne.s32.totalorder %s356, %s370
      %p372 = scmp.eq.s32.totalorder %s31, 0
      %p373 = por %p371, %p372
      %p374 = scmp.le.s32.totalorder 1, %s25
      %p375 = scmp.lt.s32.totalorder %s25, 3
      %p376 = pnand %p374, %p375
      %p377 = pneg %p376
      // Predicated region
      $region9: #{net_forward.1} parent=5 // pred_check
        _
      $region10: #{net_forward.1} parent=5 // pred_check_branch
        %379 = sbr.rel (%p376) target = $region12
      $region11: #{net_forward.1} parent=5 // pred_region
        %s380 = ssub.s32 %s25, 1
        // Predicated region
        $region13: #{net_forward.1} parent=11 // pred_check
          %p381 = pneg %p72
        $region14: #{net_forward.1} parent=11 // pred_check_branch
          %383 = sbr.rel (%p381) target = $region16
        $region15: #{net_forward.1} parent=11 // pred_region
          %385 = vsyncadd [#allocation3], 0
          %s386 = sshll.u32 %s1, 4
          %s387 = int_to_ptr.hbm [resolvable:$true] %s386
          %s388 = sshll.u32 [#allocation2], 4
          %s389 = int_to_ptr.vmem [resolvable:$true] %s388
          %394 = dma.hbm_to_vmem [thread:$0]  %s387, 20480, %s389, [#allocation3], 256, 256, 16
        $region16: #{net_forward.1} parent=11 // pred_fallthru
          _
        // Predicated region
        $region17: #{net_forward.1} parent=11 // pred_check
          %p395 = pneg %p93
        $region18: #{net_forward.1} parent=11 // pred_check_branch
          %397 = sbr.rel (%p395) target = $region20
        $region19: #{net_forward.1} parent=11 // pred_region
          _
        $region20: #{net_forward.1} parent=11 // pred_fallthru
          _
        // Predicated region
        $region21: #{net_forward.1} parent=11 // pred_check
          %p398 = pneg %p114
        $region22: #{net_forward.1} parent=11 // pred_check_branch
          %400 = sbr.rel (%p398) target = $region24
        $region23: #{net_forward.1} parent=11 // pred_region
          _
        $region24: #{net_forward.1} parent=11 // pred_fallthru
          _
        // Predicated region
        $region25: #{net_forward.1} parent=11 // pred_check
          %p401 = pneg %p135
        $region26: #{net_forward.1} parent=11 // pred_check_branch
          %403 = sbr.rel (%p401) target = $region28
        $region27: #{net_forward.1} parent=11 // pred_region
          %405 = vsyncadd [#allocation6], 0
          %s406 = sshll.u32 %s4, 4
          %s407 = int_to_ptr.hbm [resolvable:$true] %s406
          %s408 = sshll.u32 [#allocation5], 4
          %s409 = int_to_ptr.vmem [resolvable:$true] %s408
          %414 = dma.hbm_to_vmem [thread:$0]  %s407, 8192, %s409, [#allocation6], 128, 128, 8
        $region28: #{net_forward.1} parent=11 // pred_fallthru
          _
        // Predicated region
        $region29: #{net_forward.1} parent=11 // pred_check
          %p415 = pneg %p156
        $region30: #{net_forward.1} parent=11 // pred_check_branch
          %417 = sbr.rel (%p415) target = $region32
        $region31: #{net_forward.1} parent=11 // pred_region
          %419 = vsyncadd [#allocation6], 0
          %s420 = sshll.u32 %s5, 4
          %s421 = int_to_ptr.hbm [resolvable:$true] %s420
          %s422 = sshll.u32 [#allocation7], 4
          %s423 = int_to_ptr.vmem [resolvable:$true] %s422
          %428 = dma.hbm_to_vmem [thread:$0]  %s421, 20480, %s423, [#allocation6], 256, 256, 16
        $region32: #{net_forward.1} parent=11 // pred_fallthru
          _
        // Predicated region
        $region33: #{net_forward.1} parent=11 // pred_check
          %p429 = pneg %p177
        $region34: #{net_forward.1} parent=11 // pred_check_branch
          %431 = sbr.rel (%p429) target = $region36
        $region35: #{net_forward.1} parent=11 // pred_region
          _
        $region36: #{net_forward.1} parent=11 // pred_fallthru
          _
        // Predicated region
        $region37: #{net_forward.1} parent=11 // pred_check
          %p432 = pneg %p198
        $region38: #{net_forward.1} parent=11 // pred_check_branch
          %434 = sbr.rel (%p432) target = $region40
        $region39: #{net_forward.1} parent=11 // pred_region
          _
        $region40: #{net_forward.1} parent=11 // pred_fallthru
          _
        // Predicated region
        $region41: #{net_forward.1} parent=11 // pred_check
          %p435 = pneg %p219
        $region42: #{net_forward.1} parent=11 // pred_check_branch
          %437 = sbr.rel (%p435) target = $region44
        $region43: #{net_forward.1} parent=11 // pred_region
          %439 = vsyncadd [#allocation9], 0
          %s440 = sshll.u32 %s8, 4
          %s441 = int_to_ptr.hbm [resolvable:$true] %s440
          %s442 = sshll.u32 [#allocation8], 4
          %s443 = int_to_ptr.vmem [resolvable:$true] %s442
          %448 = dma.hbm_to_vmem [thread:$0]  %s441, 8192, %s443, [#allocation9], 128, 128, 8
        $region44: #{net_forward.1} parent=11 // pred_fallthru
          _
        // Predicated region
        $region45: #{net_forward.1} parent=11 // pred_check
          %p449 = pneg %p240
        $region46: #{net_forward.1} parent=11 // pred_check_branch
          %451 = sbr.rel (%p449) target = $region48
        $region47: #{net_forward.1} parent=11 // pred_region
          _
        $region48: #{net_forward.1} parent=11 // pred_fallthru
          _
        // Predicated region
        $region49: #{net_forward.1} parent=11 // pred_check
          %p452 = pneg %p261
        $region50: #{net_forward.1} parent=11 // pred_check_branch
          %454 = sbr.rel (%p452) target = $region52
        $region51: #{net_forward.1} parent=11 // pred_region
          _
        $region52: #{net_forward.1} parent=11 // pred_fallthru
          _
        // Predicated region
        $region53: #{net_forward.1} parent=11 // pred_check
          %p455 = pneg %p282
        $region54: #{net_forward.1} parent=11 // pred_check_branch
          %457 = sbr.rel (%p455) target = $region56
        $region55: #{net_forward.1} parent=11 // pred_region
          _
        $region56: #{net_forward.1} parent=11 // pred_fallthru
          _
        // Predicated region
        $region57: #{net_forward.1} parent=11 // pred_check
          %p458 = pneg %p303
        $region58: #{net_forward.1} parent=11 // pred_check_branch
          %460 = sbr.rel (%p458) target = $region60
        $region59: #{net_forward.1} parent=11 // pred_region
          _
        $region60: #{net_forward.1} parent=11 // pred_fallthru
          _
        // Predicated region
        $region61: #{net_forward.1} parent=11 // pred_check
          %p461 = pneg %p324
        $region62: #{net_forward.1} parent=11 // pred_check_branch
          %463 = sbr.rel (%p461) target = $region64
        $region63: #{net_forward.1} parent=11 // pred_region
          %465 = vsyncadd [#allocation9], 0
          %s466 = sshll.u32 %s13, 4
          %s467 = int_to_ptr.hbm [resolvable:$true] %s466
          %s468 = sshll.u32 [#allocation10], 4
          %s469 = int_to_ptr.vmem [resolvable:$true] %s468
          %474 = dma.hbm_to_vmem [thread:$0]  %s467, 2048, %s469, [#allocation9], 128, 128, 8
        $region64: #{net_forward.1} parent=11 // pred_fallthru
          _
        // Predicated region
        $region65: #{net_forward.1} parent=11 // pred_check
          %p475 = pneg %p345
        $region66: #{net_forward.1} parent=11 // pred_check_branch
          %477 = sbr.rel (%p475) target = $region68
        $region67: #{net_forward.1} parent=11 // pred_region
          _
        $region68: #{net_forward.1} parent=11 // pred_fallthru
          _
      $region12: #{net_forward.1} parent=5 // pred_fallthru
        _
      %p478 = scmp.lt.s32.totalorder %s25, 2
      // Predicated region
      $region69: #{net_forward.1} parent=5 // pred_check
        %p479 = pneg %p478
      $region70: #{net_forward.1} parent=5 // pred_check_branch
        %481 = sbr.rel (%p479) target = $region72
      $region71: #{net_forward.1} parent=5 // pred_region
        // Predicated region
        $region73: #{net_forward.1} parent=71 // pred_check
          %p482 = pneg %p45
        $region74: #{net_forward.1} parent=71 // pred_check_branch
          %484 = sbr.rel (%p482) target = $region76
        $region75: #{net_forward.1} parent=71 // pred_region
          %p485 = scmp.lt.s32.totalorder %s25, 1
          %s486 = scalar_select %p485, %s25, 1
          %s487 = smul.addr %s486, 4
          %s488 = smul.addr %s487, 8
          %s489 = scalar_lea.vmem %s0, %s488
        $region76: #{net_forward.1} parent=71 // pred_fallthru
          _
      $region72: #{net_forward.1} parent=5 // pred_fallthru
        _
      %p490 = scmp.le.s32.totalorder 1, %s25
      %p491 = scmp.lt.s32.totalorder %s25, 3
      %p492 = pnand %p490, %p491
      %p493 = pneg %p492
      // Predicated region
      $region77: #{net_forward.1} parent=5 // pred_check
        _
      $region78: #{net_forward.1} parent=5 // pred_check_branch
        %495 = sbr.rel (%p492) target = $region80
      $region79: #{net_forward.1} parent=5 // pred_region
        %s496 = ssub.s32 %s25, 1
        // Predicated region
        $region81: #{net_forward.1} parent=79 // pred_check
          %p497 = pneg %p72
        $region82: #{net_forward.1} parent=79 // pred_check_branch
          %499 = sbr.rel (%p497) target = $region84
        $region83: #{net_forward.1} parent=79 // pred_region
          %501 = dma.done [#allocation3], 20480
        $region84: #{net_forward.1} parent=79 // pred_fallthru
          _
        // Predicated region
        $region85: #{net_forward.1} parent=79 // pred_check
          %p502 = pneg %p135
        $region86: #{net_forward.1} parent=79 // pred_check_branch
          %504 = sbr.rel (%p502) target = $region88
        $region87: #{net_forward.1} parent=79 // pred_region
          %506 = dma.done [#allocation6], 8192
        $region88: #{net_forward.1} parent=79 // pred_fallthru
          _
        // Predicated region
        $region89: #{net_forward.1} parent=79 // pred_check
          %p507 = pneg %p156
        $region90: #{net_forward.1} parent=79 // pred_check_branch
          %509 = sbr.rel (%p507) target = $region92
        $region91: #{net_forward.1} parent=79 // pred_region
          %511 = dma.done [#allocation6], 20480
        $region92: #{net_forward.1} parent=79 // pred_fallthru
          _
        // Predicated region
        $region93: #{net_forward.1} parent=79 // pred_check
          %p512 = pneg %p219
        $region94: #{net_forward.1} parent=79 // pred_check_branch
          %514 = sbr.rel (%p512) target = $region96
        $region95: #{net_forward.1} parent=79 // pred_region
          %516 = dma.done [#allocation9], 8192
        $region96: #{net_forward.1} parent=79 // pred_fallthru
          _
        // Predicated region
        $region97: #{net_forward.1} parent=79 // pred_check
          %p517 = pneg %p324
        $region98: #{net_forward.1} parent=79 // pred_check_branch
          %519 = sbr.rel (%p517) target = $region100
        $region99: #{net_forward.1} parent=79 // pred_region
          %521 = dma.done [#allocation9], 2048
        $region100: #{net_forward.1} parent=79 // pred_fallthru
          _
        %p522 = scmp.lt.s32.totalorder %s30, 1
        %s523 = scalar_select %p522, %s30, 1
        %s524 = smul.addr %s523, 4
        %s525 = smul.addr %s524, 8
        %s526 = scalar_lea.vmem %s0, %s525
        %p527 = pneg %p51
        %p528 = pneg %p48
        %p529 = pneg %p72
        %p530 = pneg %p69
        %p531 = pneg %p93
        %p532 = pneg %p90
        %p533 = pneg %p114
        %p534 = pneg %p111
        %p535 = pneg %p135
        %p536 = pneg %p132
        %p537 = pneg %p156
        %p538 = pneg %p153
        %p539 = pneg %p177
        %p540 = pneg %p174
        %p541 = pneg %p198
        %p542 = pneg %p195
        %p543 = pneg %p219
        %p544 = pneg %p216
        %p545 = pneg %p240
        %p546 = pneg %p237
        %p547 = pneg %p261
        %p548 = pneg %p258
        %p549 = pneg %p282
        %p550 = pneg %p279
        %p551 = pneg %p303
        %p552 = pneg %p300
        %p553 = pneg %p324
        %p554 = pneg %p321
        %p555 = pneg %p345
        %p556 = pneg %p342
        %p557 = pneg %p366
        %p558 = pneg %p363
        %p559 = scmp.lt.s32.totalorder %s30, 1
        %s560 = scalar_select %p559, %s30, 1
        %s561 = smul.addr %s560, 4
        %s562 = smul.addr %s561, 8
        %s563 = scalar_lea.vmem %s0, %s562
        %v564 = vld [vmem:[%s563] sm:$0xff]
        %v565 = vld [vmem:[%s563 + $0x8] sm:$0xff]
        %v566 = vld [vmem:[%s563 + $0x10] sm:$0xff]
        %v567 = vld [vmem:[%s563 + $0x18] sm:$0xff]
        %v568 = vld [vmem:[#allocation2] sm:$0xff]
        %v569 = vld [vmem:[#allocation2 + $0x8] sm:$0xff]
        %v570 = vld [vmem:[#allocation2 + $0x10] sm:$0xff]
        %v571 = vld [vmem:[#allocation2 + $0x18] sm:$0xff]
        %v572 = vld [vmem:[#allocation2 + $0x20] sm:$0xff]
        %v573 = vld [vmem:[#allocation2 + $0x28] sm:$0xff]
        %v574 = vld [vmem:[#allocation2 + $0x30] sm:$0xff]
        %v575 = vld [vmem:[#allocation2 + $0x38] sm:$0xff]
        %v576 = vld [vmem:[#allocation2 + $0x40] sm:$0xff]
        %v577 = vld [vmem:[#allocation2 + $0x48] sm:$0xff]
        %v578 = vld [vmem:[#allocation2 + $0x50] sm:$0xff]
        %v579 = vld [vmem:[#allocation2 + $0x58] sm:$0xff]
        %v580 = vld [vmem:[#allocation2 + $0x60] sm:$0xff]
        %v581 = vld [vmem:[#allocation2 + $0x68] sm:$0xff]
        %v582 = vld [vmem:[#allocation2 + $0x70] sm:$0xff]
        %v583 = vld [vmem:[#allocation2 + $0x78] sm:$0xff]
        %v584 = vld [vmem:[#allocation2 + $0x80] sm:$0xff]
        %v585 = vld [vmem:[#allocation2 + $0x88] sm:$0xff]
        %v586 = vld [vmem:[#allocation2 + $0x90] sm:$0xff]
        %v587 = vld [vmem:[#allocation2 + $0x98] sm:$0xff]
        %v588 = vld [vmem:[#allocation2 + $0xa0] sm:$0xff]
        %v589 = vld [vmem:[#allocation2 + $0xa8] sm:$0xff]
        %v590 = vld [vmem:[#allocation2 + $0xb0] sm:$0xff]
        %v591 = vld [vmem:[#allocation2 + $0xb8] sm:$0xff]
        %v592 = vld [vmem:[#allocation2 + $0xc0] sm:$0xff]
        %v593 = vld [vmem:[#allocation2 + $0xc8] sm:$0xff]
        %v594 = vld [vmem:[#allocation2 + $0xd0] sm:$0xff]
        %v595 = vld [vmem:[#allocation2 + $0xd8] sm:$0xff]
        %v596 = vld [vmem:[#allocation2 + $0xe0] sm:$0xff]
        %v597 = vld [vmem:[#allocation2 + $0xe8] sm:$0xff]
        %v598 = vld [vmem:[#allocation2 + $0xf0] sm:$0xff]
        %v599 = vld [vmem:[#allocation2 + $0xf8] sm:$0xff]
        %s600 = scalar_lea.vmem [#allocation2], 256
        %v601 = vld [vmem:[%s600] sm:$0xff]
        %v602 = vld [vmem:[%s600 + $0x8] sm:$0xff]
        %v603 = vld [vmem:[%s600 + $0x10] sm:$0xff]
        %v604 = vld [vmem:[%s600 + $0x18] sm:$0xff]
        %v605 = vld [vmem:[%s600 + $0x20] sm:$0xff]
        %v606 = vld [vmem:[%s600 + $0x28] sm:$0xff]
        %v607 = vld [vmem:[%s600 + $0x30] sm:$0xff]
        %v608 = vld [vmem:[%s600 + $0x38] sm:$0xff]
        %v609 = vld [vmem:[%s600 + $0x40] sm:$0xff]
        %v610 = vld [vmem:[%s600 + $0x48] sm:$0xff]
        %v611 = vld [vmem:[%s600 + $0x50] sm:$0xff]
        %v612 = vld [vmem:[%s600 + $0x58] sm:$0xff]
        %v613 = vld [vmem:[%s600 + $0x60] sm:$0xff]
        %v614 = vld [vmem:[%s600 + $0x68] sm:$0xff]
        %v615 = vld [vmem:[%s600 + $0x70] sm:$0xff]
        %v616 = vld [vmem:[%s600 + $0x78] sm:$0xff]
        %v617 = vld [vmem:[%s600 + $0x80] sm:$0xff]
        %v618 = vld [vmem:[%s600 + $0x88] sm:$0xff]
        %v619 = vld [vmem:[%s600 + $0x90] sm:$0xff]
        %v620 = vld [vmem:[%s600 + $0x98] sm:$0xff]
        %v621 = vld [vmem:[%s600 + $0xa0] sm:$0xff]
        %v622 = vld [vmem:[%s600 + $0xa8] sm:$0xff]
        %v623 = vld [vmem:[%s600 + $0xb0] sm:$0xff]
        %v624 = vld [vmem:[%s600 + $0xb8] sm:$0xff]
        %v625 = vld [vmem:[%s600 + $0xc0] sm:$0xff]
        %v626 = vld [vmem:[%s600 + $0xc8] sm:$0xff]
        %v627 = vld [vmem:[%s600 + $0xd0] sm:$0xff]
        %v628 = vld [vmem:[%s600 + $0xd8] sm:$0xff]
        %v629 = vld [vmem:[%s600 + $0xe0] sm:$0xff]
        %v630 = vld [vmem:[%s600 + $0xe8] sm:$0xff]
        %v631 = vld [vmem:[%s600 + $0xf0] sm:$0xff]
        %v632 = vld [vmem:[%s600 + $0xf8] sm:$0xff]
        %vm637 = vcmask 1046528
        %v638 = vrot.slane %v564, 1
        %v639 = vrot.slane %v565, 1
        %v640 = vsel %vm637, %v638, %v639
        %v641 = vrot.slane %v566, 1
        %v642 = vsel %vm637, %v639, %v641
        %v643 = vrot.slane %v567, 1
        %v644 = vsel %vm637, %v641, %v643
        %649 = vmatpush.msra.mxu0 %v631
        %650 = vmatpush.msra.mxu0 %v629
        %651 = vmatpush.msra.mxu0 %v627
        %652 = vmatpush.msra.mxu0 %v625
        %653 = vmatpush.msra.mxu0 %v623
        %654 = vmatpush.msra.mxu0 %v621
        %655 = vmatpush.msra.mxu0 %v619
        %656 = vmatpush.msra.mxu0 %v617
        %657 = vmatpush.msra.mxu0 %v615
        %658 = vmatpush.msra.mxu0 %v613
        %659 = vmatpush.msra.mxu0 %v611
        %660 = vmatpush.msra.mxu0 %v609
        %661 = vmatpush.msra.mxu0 %v607
        %662 = vmatpush.msra.mxu0 %v605
        %663 = vmatpush.msra.mxu0 %v603
        %664 = vmatpush.msra.mxu0 %v601
        %665 = vmatmul.f32.gmra.mxu0 %v640
        %v666 = vpop.f32.mrf.mxu0
        %v667 = vadd.f32 0.0, %v666
        %668 = vmatmul.f32.gmra.mxu0 %v642
        %v669 = vpop.f32.mrf.mxu0
        %v670 = vadd.f32 0.0, %v669
        %671 = vmatmul.f32.gmra.mxu0 %v644
        %v672 = vpop.f32.mrf.mxu0
        %v673 = vadd.f32 0.0, %v672
        %674 = vmatmul.f32.gmra.mxu0 %v643
        %v675 = vpop.f32.mrf.mxu0
        %v676 = vadd.f32 0.0, %v675
        %677 = vdwg.mxu0
        %678 = vmatpush.msra.mxu0 %v632
        %679 = vmatpush.msra.mxu0 %v630
        %680 = vmatpush.msra.mxu0 %v628
        %681 = vmatpush.msra.mxu0 %v626
        %682 = vmatpush.msra.mxu0 %v624
        %683 = vmatpush.msra.mxu0 %v622
        %684 = vmatpush.msra.mxu0 %v620
        %685 = vmatpush.msra.mxu0 %v618
        %686 = vmatpush.msra.mxu0 %v616
        %687 = vmatpush.msra.mxu0 %v614
        %688 = vmatpush.msra.mxu0 %v612
        %689 = vmatpush.msra.mxu0 %v610
        %690 = vmatpush.msra.mxu0 %v608
        %691 = vmatpush.msra.mxu0 %v606
        %692 = vmatpush.msra.mxu0 %v604
        %693 = vmatpush.msra.mxu0 %v602
        %694 = vmatmul.f32.gmra.mxu0 %v640
        %v695 = vpop.f32.mrf.mxu0
        %v696 = vadd.f32 0.0, %v695
        %697 = vmatmul.f32.gmra.mxu0 %v642
        %v698 = vpop.f32.mrf.mxu0
        %v699 = vadd.f32 0.0, %v698
        %700 = vmatmul.f32.gmra.mxu0 %v644
        %v701 = vpop.f32.mrf.mxu0
        %v702 = vadd.f32 0.0, %v701
        %703 = vmatmul.f32.gmra.mxu0 %v643
        %v704 = vpop.f32.mrf.mxu0
        %v705 = vadd.f32 0.0, %v704
        %706 = vdwg.mxu0
        %707 = vmatpush.msra.mxu0 %v598
        %708 = vmatpush.msra.mxu0 %v596
        %709 = vmatpush.msra.mxu0 %v594
        %710 = vmatpush.msra.mxu0 %v592
        %711 = vmatpush.msra.mxu0 %v590
        %712 = vmatpush.msra.mxu0 %v588
        %713 = vmatpush.msra.mxu0 %v586
        %714 = vmatpush.msra.mxu0 %v584
        %715 = vmatpush.msra.mxu0 %v582
        %716 = vmatpush.msra.mxu0 %v580
        %717 = vmatpush.msra.mxu0 %v578
        %718 = vmatpush.msra.mxu0 %v576
        %719 = vmatpush.msra.mxu0 %v574
        %720 = vmatpush.msra.mxu0 %v572
        %721 = vmatpush.msra.mxu0 %v570
        %722 = vmatpush.msra.mxu0 %v568
        %723 = vmatmul.f32.gmra.mxu0 %v564
        %v724 = vpop.f32.mrf.mxu0
        %v725 = vadd.f32 %v667, %v724
        %726 = vmatmul.f32.gmra.mxu0 %v565
        %v727 = vpop.f32.mrf.mxu0
        %v728 = vadd.f32 %v670, %v727
        %729 = vmatmul.f32.gmra.mxu0 %v566
        %v730 = vpop.f32.mrf.mxu0
        %v731 = vadd.f32 %v673, %v730
        %732 = vmatmul.f32.gmra.mxu0 %v567
        %v733 = vpop.f32.mrf.mxu0
        %v734 = vadd.f32 %v676, %v733
        %735 = vdwg.mxu0
        %736 = vmatpush.msra.mxu0 %v599
        %737 = vmatpush.msra.mxu0 %v597
        %738 = vmatpush.msra.mxu0 %v595
        %739 = vmatpush.msra.mxu0 %v593
        %740 = vmatpush.msra.mxu0 %v591
        %741 = vmatpush.msra.mxu0 %v589
        %742 = vmatpush.msra.mxu0 %v587
        %743 = vmatpush.msra.mxu0 %v585
        %744 = vmatpush.msra.mxu0 %v583
        %745 = vmatpush.msra.mxu0 %v581
        %746 = vmatpush.msra.mxu0 %v579
        %747 = vmatpush.msra.mxu0 %v577
        %748 = vmatpush.msra.mxu0 %v575
        %749 = vmatpush.msra.mxu0 %v573
        %750 = vmatpush.msra.mxu0 %v571
        %751 = vmatpush.msra.mxu0 %v569
        %752 = vmatmul.f32.gmra.mxu0 %v564
        %v753 = vpop.f32.mrf.mxu0
        %v754 = vadd.f32 %v696, %v753
        %755 = vmatmul.f32.gmra.mxu0 %v565
        %v756 = vpop.f32.mrf.mxu0
        %v757 = vadd.f32 %v699, %v756
        %758 = vmatmul.f32.gmra.mxu0 %v566
        %v759 = vpop.f32.mrf.mxu0
        %v760 = vadd.f32 %v702, %v759
        %761 = vmatmul.f32.gmra.mxu0 %v567
        %v762 = vpop.f32.mrf.mxu0
        %v763 = vadd.f32 %v705, %v762
        %764 = vdwg.mxu0
        %s765 = scalar_lea.vmem [#allocation2], 512
        %v766 = vld [vmem:[%s765] sm:$0xff]
        %v767 = vld [vmem:[%s765 + $0x8] sm:$0xff]
        %v768 = vld [vmem:[%s765 + $0x10] sm:$0xff]
        %v769 = vld [vmem:[%s765 + $0x18] sm:$0xff]
        %v770 = vld [vmem:[%s765 + $0x20] sm:$0xff]
        %v771 = vld [vmem:[%s765 + $0x28] sm:$0xff]
        %v772 = vld [vmem:[%s765 + $0x30] sm:$0xff]
        %v773 = vld [vmem:[%s765 + $0x38] sm:$0xff]
        %v774 = vld [vmem:[%s765 + $0x40] sm:$0xff]
        %v775 = vld [vmem:[%s765 + $0x48] sm:$0xff]
        %v776 = vld [vmem:[%s765 + $0x50] sm:$0xff]
        %v777 = vld [vmem:[%s765 + $0x58] sm:$0xff]
        %v778 = vld [vmem:[%s765 + $0x60] sm:$0xff]
        %v779 = vld [vmem:[%s765 + $0x68] sm:$0xff]
        %v780 = vld [vmem:[%s765 + $0x70] sm:$0xff]
        %v781 = vld [vmem:[%s765 + $0x78] sm:$0xff]
        %v782 = vld [vmem:[%s765 + $0x80] sm:$0xff]
        %v783 = vld [vmem:[%s765 + $0x88] sm:$0xff]
        %v784 = vld [vmem:[%s765 + $0x90] sm:$0xff]
        %v785 = vld [vmem:[%s765 + $0x98] sm:$0xff]
        %v786 = vld [vmem:[%s765 + $0xa0] sm:$0xff]
        %v787 = vld [vmem:[%s765 + $0xa8] sm:$0xff]
        %v788 = vld [vmem:[%s765 + $0xb0] sm:$0xff]
        %v789 = vld [vmem:[%s765 + $0xb8] sm:$0xff]
        %v790 = vld [vmem:[%s765 + $0xc0] sm:$0xff]
        %v791 = vld [vmem:[%s765 + $0xc8] sm:$0xff]
        %v792 = vld [vmem:[%s765 + $0xd0] sm:$0xff]
        %v793 = vld [vmem:[%s765 + $0xd8] sm:$0xff]
        %v794 = vld [vmem:[%s765 + $0xe0] sm:$0xff]
        %v795 = vld [vmem:[%s765 + $0xe8] sm:$0xff]
        %v796 = vld [vmem:[%s765 + $0xf0] sm:$0xff]
        %v797 = vld [vmem:[%s765 + $0xf8] sm:$0xff]
        %vm798 = vcmask 1045504
        %v799 = vrot.slane %v564, 2
        %v800 = vrot.slane %v565, 2
        %v801 = vsel %vm798, %v799, %v800
        %v802 = vrot.slane %v566, 2
        %v803 = vsel %vm798, %v800, %v802
        %v804 = vrot.slane %v567, 2
        %v805 = vsel %vm798, %v802, %v804
        %810 = vmatpush.msra.mxu0 %v796
        %811 = vmatpush.msra.mxu0 %v794
        %812 = vmatpush.msra.mxu0 %v792
        %813 = vmatpush.msra.mxu0 %v790
        %814 = vmatpush.msra.mxu0 %v788
        %815 = vmatpush.msra.mxu0 %v786
        %816 = vmatpush.msra.mxu0 %v784
        %817 = vmatpush.msra.mxu0 %v782
        %818 = vmatpush.msra.mxu0 %v780
        %819 = vmatpush.msra.mxu0 %v778
        %820 = vmatpush.msra.mxu0 %v776
        %821 = vmatpush.msra.mxu0 %v774
        %822 = vmatpush.msra.mxu0 %v772
        %823 = vmatpush.msra.mxu0 %v770
        %824 = vmatpush.msra.mxu0 %v768
        %825 = vmatpush.msra.mxu0 %v766
        %826 = vmatmul.f32.gmra.mxu0 %v801
        %v827 = vpop.f32.mrf.mxu0
        %v828 = vadd.f32 0.0, %v827
        %829 = vmatmul.f32.gmra.mxu0 %v803
        %v830 = vpop.f32.mrf.mxu0
        %v831 = vadd.f32 0.0, %v830
        %832 = vmatmul.f32.gmra.mxu0 %v805
        %v833 = vpop.f32.mrf.mxu0
        %v834 = vadd.f32 0.0, %v833
        %835 = vmatmul.f32.gmra.mxu0 %v804
        %v836 = vpop.f32.mrf.mxu0
        %v837 = vadd.f32 0.0, %v836
        %838 = vdwg.mxu0
        %839 = vmatpush.msra.mxu0 %v797
        %840 = vmatpush.msra.mxu0 %v795
        %841 = vmatpush.msra.mxu0 %v793
        %842 = vmatpush.msra.mxu0 %v791
        %843 = vmatpush.msra.mxu0 %v789
        %844 = vmatpush.msra.mxu0 %v787
        %845 = vmatpush.msra.mxu0 %v785
        %846 = vmatpush.msra.mxu0 %v783
        %847 = vmatpush.msra.mxu0 %v781
        %848 = vmatpush.msra.mxu0 %v779
        %849 = vmatpush.msra.mxu0 %v777
        %850 = vmatpush.msra.mxu0 %v775
        %851 = vmatpush.msra.mxu0 %v773
        %852 = vmatpush.msra.mxu0 %v771
        %853 = vmatpush.msra.mxu0 %v769
        %854 = vmatpush.msra.mxu0 %v767
        %855 = vmatmul.f32.gmra.mxu0 %v801
        %v856 = vpop.f32.mrf.mxu0
        %v857 = vadd.f32 0.0, %v856
        %858 = vmatmul.f32.gmra.mxu0 %v803
        %v859 = vpop.f32.mrf.mxu0
        %v860 = vadd.f32 0.0, %v859
        %861 = vmatmul.f32.gmra.mxu0 %v805
        %v862 = vpop.f32.mrf.mxu0
        %v863 = vadd.f32 0.0, %v862
        %864 = vmatmul.f32.gmra.mxu0 %v804
        %v865 = vpop.f32.mrf.mxu0
        %v866 = vadd.f32 0.0, %v865
        %867 = vdwg.mxu0
        %v868 = vadd.f32 %v725, %v828
        %v869 = vadd.f32 %v754, %v857
        %v870 = vadd.f32 %v728, %v831
        %v871 = vadd.f32 %v757, %v860
        %v872 = vadd.f32 %v731, %v834
        %v873 = vadd.f32 %v760, %v863
        %v874 = vadd.f32 %v734, %v837
        %v875 = vadd.f32 %v763, %v866
        %s876 = scalar_lea.vmem [#allocation2], 768
        %v877 = vld [vmem:[%s876] sm:$0xff]
        %v878 = vld [vmem:[%s876 + $0x8] sm:$0xff]
        %v879 = vld [vmem:[%s876 + $0x10] sm:$0xff]
        %v880 = vld [vmem:[%s876 + $0x18] sm:$0xff]
        %v881 = vld [vmem:[%s876 + $0x20] sm:$0xff]
        %v882 = vld [vmem:[%s876 + $0x28] sm:$0xff]
        %v883 = vld [vmem:[%s876 + $0x30] sm:$0xff]
        %v884 = vld [vmem:[%s876 + $0x38] sm:$0xff]
        %v885 = vld [vmem:[%s876 + $0x40] sm:$0xff]
        %v886 = vld [vmem:[%s876 + $0x48] sm:$0xff]
        %v887 = vld [vmem:[%s876 + $0x50] sm:$0xff]
        %v888 = vld [vmem:[%s876 + $0x58] sm:$0xff]
        %v889 = vld [vmem:[%s876 + $0x60] sm:$0xff]
        %v890 = vld [vmem:[%s876 + $0x68] sm:$0xff]
        %v891 = vld [vmem:[%s876 + $0x70] sm:$0xff]
        %v892 = vld [vmem:[%s876 + $0x78] sm:$0xff]
        %v893 = vld [vmem:[%s876 + $0x80] sm:$0xff]
        %v894 = vld [vmem:[%s876 + $0x88] sm:$0xff]
        %v895 = vld [vmem:[%s876 + $0x90] sm:$0xff]
        %v896 = vld [vmem:[%s876 + $0x98] sm:$0xff]
        %v897 = vld [vmem:[%s876 + $0xa0] sm:$0xff]
        %v898 = vld [vmem:[%s876 + $0xa8] sm:$0xff]
        %v899 = vld [vmem:[%s876 + $0xb0] sm:$0xff]
        %v900 = vld [vmem:[%s876 + $0xb8] sm:$0xff]
        %v901 = vld [vmem:[%s876 + $0xc0] sm:$0xff]
        %v902 = vld [vmem:[%s876 + $0xc8] sm:$0xff]
        %v903 = vld [vmem:[%s876 + $0xd0] sm:$0xff]
        %v904 = vld [vmem:[%s876 + $0xd8] sm:$0xff]
        %v905 = vld [vmem:[%s876 + $0xe0] sm:$0xff]
        %v906 = vld [vmem:[%s876 + $0xe8] sm:$0xff]
        %v907 = vld [vmem:[%s876 + $0xf0] sm:$0xff]
        %v908 = vld [vmem:[%s876 + $0xf8] sm:$0xff]
        %vm909 = vcmask 1044480
        %v910 = vrot.slane %v564, 3
        %v911 = vrot.slane %v565, 3
        %v912 = vsel %vm909, %v910, %v911
        %v913 = vrot.slane %v566, 3
        %v914 = vsel %vm909, %v911, %v913
        %v915 = vrot.slane %v567, 3
        %v916 = vsel %vm909, %v913, %v915
        %921 = vmatpush.msra.mxu0 %v907
        %922 = vmatpush.msra.mxu0 %v905
        %923 = vmatpush.msra.mxu0 %v903
        %924 = vmatpush.msra.mxu0 %v901
        %925 = vmatpush.msra.mxu0 %v899
        %926 = vmatpush.msra.mxu0 %v897
        %927 = vmatpush.msra.mxu0 %v895
        %928 = vmatpush.msra.mxu0 %v893
        %929 = vmatpush.msra.mxu0 %v891
        %930 = vmatpush.msra.mxu0 %v889
        %931 = vmatpush.msra.mxu0 %v887
        %932 = vmatpush.msra.mxu0 %v885
        %933 = vmatpush.msra.mxu0 %v883
        %934 = vmatpush.msra.mxu0 %v881
        %935 = vmatpush.msra.mxu0 %v879
        %936 = vmatpush.msra.mxu0 %v877
        %937 = vmatmul.f32.gmra.mxu0 %v912
        %v938 = vpop.f32.mrf.mxu0
        %v939 = vadd.f32 0.0, %v938
        %940 = vmatmul.f32.gmra.mxu0 %v914
        %v941 = vpop.f32.mrf.mxu0
        %v942 = vadd.f32 0.0, %v941
        %943 = vmatmul.f32.gmra.mxu0 %v916
        %v944 = vpop.f32.mrf.mxu0
        %v945 = vadd.f32 0.0, %v944
        %946 = vmatmul.f32.gmra.mxu0 %v915
        %v947 = vpop.f32.mrf.mxu0
        %v948 = vadd.f32 0.0, %v947
        %949 = vdwg.mxu0
        %950 = vmatpush.msra.mxu0 %v908
        %951 = vmatpush.msra.mxu0 %v906
        %952 = vmatpush.msra.mxu0 %v904
        %953 = vmatpush.msra.mxu0 %v902
        %954 = vmatpush.msra.mxu0 %v900
        %955 = vmatpush.msra.mxu0 %v898
        %956 = vmatpush.msra.mxu0 %v896
        %957 = vmatpush.msra.mxu0 %v894
        %958 = vmatpush.msra.mxu0 %v892
        %959 = vmatpush.msra.mxu0 %v890
        %960 = vmatpush.msra.mxu0 %v888
        %961 = vmatpush.msra.mxu0 %v886
        %962 = vmatpush.msra.mxu0 %v884
        %963 = vmatpush.msra.mxu0 %v882
        %964 = vmatpush.msra.mxu0 %v880
        %965 = vmatpush.msra.mxu0 %v878
        %966 = vmatmul.f32.gmra.mxu0 %v912
        %v967 = vpop.f32.mrf.mxu0
        %v968 = vadd.f32 0.0, %v967
        %969 = vmatmul.f32.gmra.mxu0 %v914
        %v970 = vpop.f32.mrf.mxu0
        %v971 = vadd.f32 0.0, %v970
        %972 = vmatmul.f32.gmra.mxu0 %v916
        %v973 = vpop.f32.mrf.mxu0
        %v974 = vadd.f32 0.0, %v973
        %975 = vmatmul.f32.gmra.mxu0 %v915
        %v976 = vpop.f32.mrf.mxu0
        %v977 = vadd.f32 0.0, %v976
        %978 = vdwg.mxu0
        %v979 = vadd.f32 %v868, %v939
        %v980 = vadd.f32 %v869, %v968
        %v981 = vadd.f32 %v870, %v942
        %v982 = vadd.f32 %v871, %v971
        %v983 = vadd.f32 %v872, %v945
        %v984 = vadd.f32 %v873, %v974
        %v985 = vadd.f32 %v874, %v948
        %v986 = vadd.f32 %v875, %v977
        %s987 = scalar_lea.vmem [#allocation2], 1024
        %v988 = vld [vmem:[%s987] sm:$0xff]
        %v989 = vld [vmem:[%s987 + $0x8] sm:$0xff]
        %v990 = vld [vmem:[%s987 + $0x10] sm:$0xff]
        %v991 = vld [vmem:[%s987 + $0x18] sm:$0xff]
        %v992 = vld [vmem:[%s987 + $0x20] sm:$0xff]
        %v993 = vld [vmem:[%s987 + $0x28] sm:$0xff]
        %v994 = vld [vmem:[%s987 + $0x30] sm:$0xff]
        %v995 = vld [vmem:[%s987 + $0x38] sm:$0xff]
        %v996 = vld [vmem:[%s987 + $0x40] sm:$0xff]
        %v997 = vld [vmem:[%s987 + $0x48] sm:$0xff]
        %v998 = vld [vmem:[%s987 + $0x50] sm:$0xff]
        %v999 = vld [vmem:[%s987 + $0x58] sm:$0xff]
        %v1000 = vld [vmem:[%s987 + $0x60] sm:$0xff]
        %v1001 = vld [vmem:[%s987 + $0x68] sm:$0xff]
        %v1002 = vld [vmem:[%s987 + $0x70] sm:$0xff]
        %v1003 = vld [vmem:[%s987 + $0x78] sm:$0xff]
        %v1004 = vld [vmem:[%s987 + $0x80] sm:$0xff]
        %v1005 = vld [vmem:[%s987 + $0x88] sm:$0xff]
        %v1006 = vld [vmem:[%s987 + $0x90] sm:$0xff]
        %v1007 = vld [vmem:[%s987 + $0x98] sm:$0xff]
        %v1008 = vld [vmem:[%s987 + $0xa0] sm:$0xff]
        %v1009 = vld [vmem:[%s987 + $0xa8] sm:$0xff]
        %v1010 = vld [vmem:[%s987 + $0xb0] sm:$0xff]
        %v1011 = vld [vmem:[%s987 + $0xb8] sm:$0xff]
        %v1012 = vld [vmem:[%s987 + $0xc0] sm:$0xff]
        %v1013 = vld [vmem:[%s987 + $0xc8] sm:$0xff]
        %v1014 = vld [vmem:[%s987 + $0xd0] sm:$0xff]
        %v1015 = vld [vmem:[%s987 + $0xd8] sm:$0xff]
        %v1016 = vld [vmem:[%s987 + $0xe0] sm:$0xff]
        %v1017 = vld [vmem:[%s987 + $0xe8] sm:$0xff]
        %v1018 = vld [vmem:[%s987 + $0xf0] sm:$0xff]
        %v1019 = vld [vmem:[%s987 + $0xf8] sm:$0xff]
        %vm1020 = vcmask 1043456
        %v1021 = vrot.slane %v564, 4
        %v1022 = vrot.slane %v565, 4
        %v1023 = vsel %vm1020, %v1021, %v1022
        %v1024 = vrot.slane %v566, 4
        %v1025 = vsel %vm1020, %v1022, %v1024
        %v1026 = vrot.slane %v567, 4
        %v1027 = vsel %vm1020, %v1024, %v1026
        %1032 = vmatpush.msra.mxu0 %v1018
        %1033 = vmatpush.msra.mxu0 %v1016
        %1034 = vmatpush.msra.mxu0 %v1014
        %1035 = vmatpush.msra.mxu0 %v1012
        %1036 = vmatpush.msra.mxu0 %v1010
        %1037 = vmatpush.msra.mxu0 %v1008
        %1038 = vmatpush.msra.mxu0 %v1006
        %1039 = vmatpush.msra.mxu0 %v1004
        %1040 = vmatpush.msra.mxu0 %v1002
        %1041 = vmatpush.msra.mxu0 %v1000
        %1042 = vmatpush.msra.mxu0 %v998
        %1043 = vmatpush.msra.mxu0 %v996
        %1044 = vmatpush.msra.mxu0 %v994
        %1045 = vmatpush.msra.mxu0 %v992
        %1046 = vmatpush.msra.mxu0 %v990
        %1047 = vmatpush.msra.mxu0 %v988
        %1048 = vmatmul.f32.gmra.mxu0 %v1023
        %v1049 = vpop.f32.mrf.mxu0
        %v1050 = vadd.f32 0.0, %v1049
        %1051 = vmatmul.f32.gmra.mxu0 %v1025
        %v1052 = vpop.f32.mrf.mxu0
        %v1053 = vadd.f32 0.0, %v1052
        %1054 = vmatmul.f32.gmra.mxu0 %v1027
        %v1055 = vpop.f32.mrf.mxu0
        %v1056 = vadd.f32 0.0, %v1055
        %1057 = vmatmul.f32.gmra.mxu0 %v1026
        %v1058 = vpop.f32.mrf.mxu0
        %v1059 = vadd.f32 0.0, %v1058
        %1060 = vdwg.mxu0
        %1061 = vmatpush.msra.mxu0 %v1019
        %1062 = vmatpush.msra.mxu0 %v1017
        %1063 = vmatpush.msra.mxu0 %v1015
        %1064 = vmatpush.msra.mxu0 %v1013
        %1065 = vmatpush.msra.mxu0 %v1011
        %1066 = vmatpush.msra.mxu0 %v1009
        %1067 = vmatpush.msra.mxu0 %v1007
        %1068 = vmatpush.msra.mxu0 %v1005
        %1069 = vmatpush.msra.mxu0 %v1003
        %1070 = vmatpush.msra.mxu0 %v1001
        %1071 = vmatpush.msra.mxu0 %v999
        %1072 = vmatpush.msra.mxu0 %v997
        %1073 = vmatpush.msra.mxu0 %v995
        %1074 = vmatpush.msra.mxu0 %v993
        %1075 = vmatpush.msra.mxu0 %v991
        %1076 = vmatpush.msra.mxu0 %v989
        %1077 = vmatmul.f32.gmra.mxu0 %v1023
        %v1078 = vpop.f32.mrf.mxu0
        %v1079 = vadd.f32 0.0, %v1078
        %1080 = vmatmul.f32.gmra.mxu0 %v1025
        %v1081 = vpop.f32.mrf.mxu0
        %v1082 = vadd.f32 0.0, %v1081
        %1083 = vmatmul.f32.gmra.mxu0 %v1027
        %v1084 = vpop.f32.mrf.mxu0
        %v1085 = vadd.f32 0.0, %v1084
        %1086 = vmatmul.f32.gmra.mxu0 %v1026
        %v1087 = vpop.f32.mrf.mxu0
        %v1088 = vadd.f32 0.0, %v1087
        %1089 = vdwg.mxu0
        %v1090 = vadd.f32 %v979, %v1050
        %v1091 = vadd.f32 %v980, %v1079
        %v1092 = vadd.f32 %v981, %v1053
        %v1093 = vadd.f32 %v982, %v1082
        %v1094 = vadd.f32 %v983, %v1056
        %v1095 = vadd.f32 %v984, %v1085
        %v1096 = vadd.f32 %v985, %v1059
        %v1097 = vadd.f32 %v986, %v1088
        %v1098 = vld [vmem:[%s2] sm:$0x3]
        %v1100 = vperm.slane %v1098, 0
        %v1101 = vperm.slane %v1098, 1
        %v1104 = vadd.f32 %v1090, %v1100
        %v1105 = vadd.f32 %v1091, %v1101
        %v1106 = vadd.f32 %v1092, %v1100
        %v1107 = vadd.f32 %v1093, %v1101
        %v1108 = vadd.f32 %v1094, %v1100
        %v1109 = vadd.f32 %v1095, %v1101
        %v1110 = vadd.f32 %v1096, %v1100
        %v1111 = vadd.f32 %v1097, %v1101
        %v1112 = vmax.f32 %v1104, 0.0
        %v1113 = vmax.f32 %v1105, 0.0
        %v1114 = vmax.f32 %v1106, 0.0
        %v1115 = vmax.f32 %v1107, 0.0
        %v1116 = vmax.f32 %v1108, 0.0
        %v1117 = vmax.f32 %v1109, 0.0
        %v1118 = vmax.f32 %v1110, 0.0
        %v1119 = vmax.f32 %v1111, 0.0
        %v1120 = vld [vmem:[%s3] sm:$0xff]
        %v1121 = vld [vmem:[%s3 + $0x8] sm:$0x3f]
        %vm1122 = vcmask 228352
        %v1124 = vsel %vm1122, %v1120, 0
        %v1127 = vsel %vm1122, %v1121, 0
        %v1130 = vsel %vm1020, %v1118, 0
        %v1133 = vsel %vm1020, %v1119, 0
        %1135 = vmatpush.msra.mxu0 0.0
        %1136 = vmatpush.msra.mxu0 0.0
        %1137 = vmatpush.msra.mxu0 0.0
        %1138 = vmatpush.msra.mxu0 0.0
        %1139 = vmatpush.msra.mxu0 0.0
        %1140 = vmatpush.msra.mxu0 0.0
        %1141 = vmatpush.msra.mxu0 0.0
        %1142 = vmatpush.msra.mxu0 0.0
        %1143 = vmatpush.msra.mxu0 0.0
        %1144 = vmatpush.msra.mxu0 0.0
        %1145 = vmatpush.msra.mxu0 0.0
        %1146 = vmatpush.msra.mxu0 0.0
        %1147 = vmatpush.msra.mxu0 %v1130
        %1148 = vmatpush.msra.mxu0 %v1116
        %1149 = vmatpush.msra.mxu0 %v1114
        %1150 = vmatpush.msra.mxu0 %v1112
        %1151 = vmatmul.f32.gmra.mxu0 %v1124
        %v1152 = vpop.f32.mrf.mxu0
        %v1153 = vadd.f32 0.0, %v1152
        %1154 = vmatmul.f32.gmra.mxu0 %v1127
        %v1155 = vpop.f32.mrf.mxu0
        %v1156 = vadd.f32 0.0, %v1155
        %1157 = vdwg.mxu0
        %1158 = vmatpush.msra.mxu0 0.0
        %1159 = vmatpush.msra.mxu0 0.0
        %1160 = vmatpush.msra.mxu0 0.0
        %1161 = vmatpush.msra.mxu0 0.0
        %1162 = vmatpush.msra.mxu0 0.0
        %1163 = vmatpush.msra.mxu0 0.0
        %1164 = vmatpush.msra.mxu0 0.0
        %1165 = vmatpush.msra.mxu0 0.0
        %1166 = vmatpush.msra.mxu0 0.0
        %1167 = vmatpush.msra.mxu0 0.0
        %1168 = vmatpush.msra.mxu0 0.0
        %1169 = vmatpush.msra.mxu0 0.0
        %1170 = vmatpush.msra.mxu0 %v1133
        %1171 = vmatpush.msra.mxu0 %v1117
        %1172 = vmatpush.msra.mxu0 %v1115
        %1173 = vmatpush.msra.mxu0 %v1113
        %1174 = vmatmul.f32.gmra.mxu0 %v1124
        %v1175 = vpop.f32.mrf.mxu0
        %v1176 = vadd.f32 0.0, %v1175
        %1177 = vmatmul.f32.gmra.mxu0 %v1127
        %v1178 = vpop.f32.mrf.mxu0
        %v1179 = vadd.f32 0.0, %v1178
        %1180 = vdwg.mxu0
        %s1181 = scalar_lea.vmem %s3, 16
        %v1182 = vld [vmem:[%s1181] sm:$0xff]
        %v1183 = vld [vmem:[%s1181 + $0x8] sm:$0x3f]
        %v1185 = vsel %vm1122, %v1182, 0
        %v1188 = vsel %vm1122, %v1183, 0
        %1190 = vmatpush.msra.mxu0 0.0
        %1191 = vmatpush.msra.mxu0 0.0
        %1192 = vmatpush.msra.mxu0 0.0
        %1193 = vmatpush.msra.mxu0 0.0
        %1194 = vmatpush.msra.mxu0 0.0
        %1195 = vmatpush.msra.mxu0 0.0
        %1196 = vmatpush.msra.mxu0 0.0
        %1197 = vmatpush.msra.mxu0 0.0
        %1198 = vmatpush.msra.mxu0 0.0
        %1199 = vmatpush.msra.mxu0 0.0
        %1200 = vmatpush.msra.mxu0 0.0
        %1201 = vmatpush.msra.mxu0 0.0
        %1202 = vmatpush.msra.mxu0 %v1130
        %1203 = vmatpush.msra.mxu0 %v1116
        %1204 = vmatpush.msra.mxu0 %v1114
        %1205 = vmatpush.msra.mxu0 %v1112
        %1206 = vmatmul.f32.gmra.mxu0 %v1185
        %v1207 = vpop.f32.mrf.mxu0
        %v1208 = vadd.f32 0.0, %v1207
        %1209 = vmatmul.f32.gmra.mxu0 %v1188
        %v1210 = vpop.f32.mrf.mxu0
        %v1211 = vadd.f32 0.0, %v1210
        %1212 = vdwg.mxu0
        %1213 = vmatpush.msra.mxu0 0.0
        %1214 = vmatpush.msra.mxu0 0.0
        %1215 = vmatpush.msra.mxu0 0.0
        %1216 = vmatpush.msra.mxu0 0.0
        %1217 = vmatpush.msra.mxu0 0.0
        %1218 = vmatpush.msra.mxu0 0.0
        %1219 = vmatpush.msra.mxu0 0.0
        %1220 = vmatpush.msra.mxu0 0.0
        %1221 = vmatpush.msra.mxu0 0.0
        %1222 = vmatpush.msra.mxu0 0.0
        %1223 = vmatpush.msra.mxu0 0.0
        %1224 = vmatpush.msra.mxu0 0.0
        %1225 = vmatpush.msra.mxu0 %v1133
        %1226 = vmatpush.msra.mxu0 %v1117
        %1227 = vmatpush.msra.mxu0 %v1115
        %1228 = vmatpush.msra.mxu0 %v1113
        %1229 = vmatmul.f32.gmra.mxu0 %v1185
        %v1230 = vpop.f32.mrf.mxu0
        %v1231 = vadd.f32 0.0, %v1230
        %1232 = vmatmul.f32.gmra.mxu0 %v1188
        %v1233 = vpop.f32.mrf.mxu0
        %v1234 = vadd.f32 0.0, %v1233
        %1235 = vdwg.mxu0
        %v1236 = vmax.f32 %v1153, %v1208
        %v1237 = vmax.f32 %v1176, %v1231
        %v1238 = vmax.f32 %v1156, %v1211
        %v1239 = vmax.f32 %v1179, %v1234
        %v1240 = vld [vmem:[#allocation5] sm:$0xff]
        %v1241 = vld [vmem:[#allocation5 + $0x8] sm:$0xff]
        %v1242 = vld [vmem:[#allocation5 + $0x10] sm:$0xff]
        %v1243 = vld [vmem:[#allocation5 + $0x18] sm:$0xff]
        %v1244 = vld [vmem:[#allocation5 + $0x20] sm:$0xff]
        %v1245 = vld [vmem:[#allocation5 + $0x28] sm:$0xff]
        %v1246 = vld [vmem:[#allocation5 + $0x30] sm:$0xff]
        %v1247 = vld [vmem:[#allocation5 + $0x38] sm:$0xff]
        %v1248 = vld [vmem:[#allocation5 + $0x40] sm:$0xff]
        %v1249 = vld [vmem:[#allocation5 + $0x48] sm:$0xff]
        %v1250 = vld [vmem:[#allocation5 + $0x50] sm:$0xff]
        %v1251 = vld [vmem:[#allocation5 + $0x58] sm:$0xff]
        %v1252 = vld [vmem:[#allocation5 + $0x60] sm:$0xff]
        %v1253 = vld [vmem:[#allocation5 + $0x68] sm:$0xff]
        %v1254 = vld [vmem:[#allocation5 + $0x70] sm:$0xff]
        %v1255 = vld [vmem:[#allocation5 + $0x78] sm:$0xff]
        %v1256 = vld [vmem:[#allocation5 + $0x80] sm:$0xff]
        %v1257 = vld [vmem:[#allocation5 + $0x88] sm:$0xff]
        %v1258 = vld [vmem:[#allocation5 + $0x90] sm:$0xff]
        %v1259 = vld [vmem:[#allocation5 + $0x98] sm:$0xff]
        %v1260 = vld [vmem:[#allocation5 + $0xa0] sm:$0xff]
        %v1261 = vld [vmem:[#allocation5 + $0xa8] sm:$0xff]
        %v1262 = vld [vmem:[#allocation5 + $0xb0] sm:$0xff]
        %v1263 = vld [vmem:[#allocation5 + $0xb8] sm:$0xff]
        %v1264 = vld [vmem:[#allocation5 + $0xc0] sm:$0xff]
        %v1265 = vld [vmem:[#allocation5 + $0xc8] sm:$0xff]
        %v1266 = vld [vmem:[#allocation5 + $0xd0] sm:$0xff]
        %v1267 = vld [vmem:[#allocation5 + $0xd8] sm:$0xff]
        %v1268 = vld [vmem:[#allocation5 + $0xe0] sm:$0xff]
        %v1269 = vld [vmem:[#allocation5 + $0xe8] sm:$0xff]
        %v1270 = vld [vmem:[#allocation5 + $0xf0] sm:$0xff]
        %v1271 = vld [vmem:[#allocation5 + $0xf8] sm:$0xff]
        %1272 = vmatpush.msra.mxu0 %v1255
        %1273 = vmatpush.msra.mxu0 %v1254
        %1274 = vmatpush.msra.mxu0 %v1253
        %1275 = vmatpush.msra.mxu0 %v1252
        %1276 = vmatpush.msra.mxu0 %v1251
        %1277 = vmatpush.msra.mxu0 %v1250
        %1278 = vmatpush.msra.mxu0 %v1249
        %1279 = vmatpush.msra.mxu0 %v1248
        %1280 = vmatpush.msra.mxu0 %v1247
        %1281 = vmatpush.msra.mxu0 %v1246
        %1282 = vmatpush.msra.mxu0 %v1245
        %1283 = vmatpush.msra.mxu0 %v1244
        %1284 = vmatpush.msra.mxu0 %v1243
        %1285 = vmatpush.msra.mxu0 %v1242
        %1286 = vmatpush.msra.mxu0 %v1241
        %1287 = vmatpush.msra.mxu0 %v1240
        %1288 = vmatmul.f32.gmra.mxu0 %v1236
        %v1289 = vpop.f32.mrf.mxu0
        %v1290 = vadd.f32 0.0, %v1289
        %1291 = vmatmul.f32.gmra.mxu0 %v1238
        %v1292 = vpop.f32.mrf.mxu0
        %v1293 = vadd.f32 0.0, %v1292
        %1294 = vdwg.mxu0
        %1295 = vmatpush.msra.mxu0 %v1271
        %1296 = vmatpush.msra.mxu0 %v1270
        %1297 = vmatpush.msra.mxu0 %v1269
        %1298 = vmatpush.msra.mxu0 %v1268
        %1299 = vmatpush.msra.mxu0 %v1267
        %1300 = vmatpush.msra.mxu0 %v1266
        %1301 = vmatpush.msra.mxu0 %v1265
        %1302 = vmatpush.msra.mxu0 %v1264
        %1303 = vmatpush.msra.mxu0 %v1263
        %1304 = vmatpush.msra.mxu0 %v1262
        %1305 = vmatpush.msra.mxu0 %v1261
        %1306 = vmatpush.msra.mxu0 %v1260
        %1307 = vmatpush.msra.mxu0 %v1259
        %1308 = vmatpush.msra.mxu0 %v1258
        %1309 = vmatpush.msra.mxu0 %v1257
        %1310 = vmatpush.msra.mxu0 %v1256
        %1311 = vmatmul.f32.gmra.mxu0 %v1237
        %v1312 = vpop.f32.mrf.mxu0
        %v1313 = vadd.f32 %v1290, %v1312
        %1314 = vmatmul.f32.gmra.mxu0 %v1239
        %v1315 = vpop.f32.mrf.mxu0
        %v1316 = vadd.f32 %v1293, %v1315
        %1317 = vdwg.mxu0
        %s1318 = scalar_lea.vmem [#allocation5], 256
        %v1319 = vld [vmem:[%s1318] sm:$0xff]
        %v1320 = vld [vmem:[%s1318 + $0x8] sm:$0xff]
        %v1321 = vld [vmem:[%s1318 + $0x10] sm:$0xff]
        %v1322 = vld [vmem:[%s1318 + $0x18] sm:$0xff]
        %v1323 = vld [vmem:[%s1318 + $0x20] sm:$0xff]
        %v1324 = vld [vmem:[%s1318 + $0x28] sm:$0xff]
        %v1325 = vld [vmem:[%s1318 + $0x30] sm:$0xff]
        %v1326 = vld [vmem:[%s1318 + $0x38] sm:$0xff]
        %v1327 = vld [vmem:[%s1318 + $0x40] sm:$0xff]
        %v1328 = vld [vmem:[%s1318 + $0x48] sm:$0xff]
        %v1329 = vld [vmem:[%s1318 + $0x50] sm:$0xff]
        %v1330 = vld [vmem:[%s1318 + $0x58] sm:$0xff]
        %v1331 = vld [vmem:[%s1318 + $0x60] sm:$0xff]
        %v1332 = vld [vmem:[%s1318 + $0x68] sm:$0xff]
        %v1333 = vld [vmem:[%s1318 + $0x70] sm:$0xff]
        %v1334 = vld [vmem:[%s1318 + $0x78] sm:$0xff]
        %v1335 = vld [vmem:[%s1318 + $0x80] sm:$0xff]
        %v1336 = vld [vmem:[%s1318 + $0x88] sm:$0xff]
        %v1337 = vld [vmem:[%s1318 + $0x90] sm:$0xff]
        %v1338 = vld [vmem:[%s1318 + $0x98] sm:$0xff]
        %v1339 = vld [vmem:[%s1318 + $0xa0] sm:$0xff]
        %v1340 = vld [vmem:[%s1318 + $0xa8] sm:$0xff]
        %v1341 = vld [vmem:[%s1318 + $0xb0] sm:$0xff]
        %v1342 = vld [vmem:[%s1318 + $0xb8] sm:$0xff]
        %v1343 = vld [vmem:[%s1318 + $0xc0] sm:$0xff]
        %v1344 = vld [vmem:[%s1318 + $0xc8] sm:$0xff]
        %v1345 = vld [vmem:[%s1318 + $0xd0] sm:$0xff]
        %v1346 = vld [vmem:[%s1318 + $0xd8] sm:$0xff]
        %v1347 = vld [vmem:[%s1318 + $0xe0] sm:$0xff]
        %v1348 = vld [vmem:[%s1318 + $0xe8] sm:$0xff]
        %v1349 = vld [vmem:[%s1318 + $0xf0] sm:$0xff]
        %v1350 = vld [vmem:[%s1318 + $0xf8] sm:$0xff]
        %1351 = vmatpush.msra.mxu0 %v1334
        %1352 = vmatpush.msra.mxu0 %v1333
        %1353 = vmatpush.msra.mxu0 %v1332
        %1354 = vmatpush.msra.mxu0 %v1331
        %1355 = vmatpush.msra.mxu0 %v1330
        %1356 = vmatpush.msra.mxu0 %v1329
        %1357 = vmatpush.msra.mxu0 %v1328
        %1358 = vmatpush.msra.mxu0 %v1327
        %1359 = vmatpush.msra.mxu0 %v1326
        %1360 = vmatpush.msra.mxu0 %v1325
        %1361 = vmatpush.msra.mxu0 %v1324
        %1362 = vmatpush.msra.mxu0 %v1323
        %1363 = vmatpush.msra.mxu0 %v1322
        %1364 = vmatpush.msra.mxu0 %v1321
        %1365 = vmatpush.msra.mxu0 %v1320
        %1366 = vmatpush.msra.mxu0 %v1319
        %1367 = vmatmul.f32.gmra.mxu0 %v1236
        %v1368 = vpop.f32.mrf.mxu0
        %v1369 = vadd.f32 0.0, %v1368
        %1370 = vmatmul.f32.gmra.mxu0 %v1238
        %v1371 = vpop.f32.mrf.mxu0
        %v1372 = vadd.f32 0.0, %v1371
        %1373 = vdwg.mxu0
        %1374 = vmatpush.msra.mxu0 %v1350
        %1375 = vmatpush.msra.mxu0 %v1349
        %1376 = vmatpush.msra.mxu0 %v1348
        %1377 = vmatpush.msra.mxu0 %v1347
        %1378 = vmatpush.msra.mxu0 %v1346
        %1379 = vmatpush.msra.mxu0 %v1345
        %1380 = vmatpush.msra.mxu0 %v1344
        %1381 = vmatpush.msra.mxu0 %v1343
        %1382 = vmatpush.msra.mxu0 %v1342
        %1383 = vmatpush.msra.mxu0 %v1341
        %1384 = vmatpush.msra.mxu0 %v1340
        %1385 = vmatpush.msra.mxu0 %v1339
        %1386 = vmatpush.msra.mxu0 %v1338
        %1387 = vmatpush.msra.mxu0 %v1337
        %1388 = vmatpush.msra.mxu0 %v1336
        %1389 = vmatpush.msra.mxu0 %v1335
        %1390 = vmatmul.f32.gmra.mxu0 %v1237
        %v1391 = vpop.f32.mrf.mxu0
        %v1392 = vadd.f32 %v1369, %v1391
        %1393 = vmatmul.f32.gmra.mxu0 %v1239
        %v1394 = vpop.f32.mrf.mxu0
        %v1395 = vadd.f32 %v1372, %v1394
        %1396 = vdwg.mxu0
        %v1397 = vmax.f32 %v1313, %v1392
        %v1398 = vmax.f32 %v1316, %v1395
        %v1399 = vld [vmem:[#allocation7] sm:$0xff]
        %v1400 = vld [vmem:[#allocation7 + $0x8] sm:$0xff]
        %v1401 = vld [vmem:[#allocation7 + $0x10] sm:$0xff]
        %v1402 = vld [vmem:[#allocation7 + $0x18] sm:$0xff]
        %v1403 = vld [vmem:[#allocation7 + $0x20] sm:$0xff]
        %v1404 = vld [vmem:[#allocation7 + $0x28] sm:$0xff]
        %v1405 = vld [vmem:[#allocation7 + $0x30] sm:$0xff]
        %v1406 = vld [vmem:[#allocation7 + $0x38] sm:$0xff]
        %v1407 = vld [vmem:[#allocation7 + $0x40] sm:$0xff]
        %v1408 = vld [vmem:[#allocation7 + $0x48] sm:$0xff]
        %v1409 = vld [vmem:[#allocation7 + $0x50] sm:$0xff]
        %v1410 = vld [vmem:[#allocation7 + $0x58] sm:$0xff]
        %v1411 = vld [vmem:[#allocation7 + $0x60] sm:$0xff]
        %v1412 = vld [vmem:[#allocation7 + $0x68] sm:$0xff]
        %v1413 = vld [vmem:[#allocation7 + $0x70] sm:$0xff]
        %v1414 = vld [vmem:[#allocation7 + $0x78] sm:$0xff]
        %v1415 = vld [vmem:[#allocation7 + $0x80] sm:$0xff]
        %v1416 = vld [vmem:[#allocation7 + $0x88] sm:$0xff]
        %v1417 = vld [vmem:[#allocation7 + $0x90] sm:$0xff]
        %v1418 = vld [vmem:[#allocation7 + $0x98] sm:$0xff]
        %v1419 = vld [vmem:[#allocation7 + $0xa0] sm:$0xff]
        %v1420 = vld [vmem:[#allocation7 + $0xa8] sm:$0xff]
        %v1421 = vld [vmem:[#allocation7 + $0xb0] sm:$0xff]
        %v1422 = vld [vmem:[#allocation7 + $0xb8] sm:$0xff]
        %v1423 = vld [vmem:[#allocation7 + $0xc0] sm:$0xff]
        %v1424 = vld [vmem:[#allocation7 + $0xc8] sm:$0xff]
        %v1425 = vld [vmem:[#allocation7 + $0xd0] sm:$0xff]
        %v1426 = vld [vmem:[#allocation7 + $0xd8] sm:$0xff]
        %v1427 = vld [vmem:[#allocation7 + $0xe0] sm:$0xff]
        %v1428 = vld [vmem:[#allocation7 + $0xe8] sm:$0xff]
        %v1429 = vld [vmem:[#allocation7 + $0xf0] sm:$0xff]
        %v1430 = vld [vmem:[#allocation7 + $0xf8] sm:$0xff]
        %s1431 = scalar_lea.vmem [#allocation7], 256
        %v1432 = vld [vmem:[%s1431] sm:$0xff]
        %v1433 = vld [vmem:[%s1431 + $0x8] sm:$0xff]
        %v1434 = vld [vmem:[%s1431 + $0x10] sm:$0xff]
        %v1435 = vld [vmem:[%s1431 + $0x18] sm:$0xff]
        %v1436 = vld [vmem:[%s1431 + $0x20] sm:$0xff]
        %v1437 = vld [vmem:[%s1431 + $0x28] sm:$0xff]
        %v1438 = vld [vmem:[%s1431 + $0x30] sm:$0xff]
        %v1439 = vld [vmem:[%s1431 + $0x38] sm:$0xff]
        %v1440 = vld [vmem:[%s1431 + $0x40] sm:$0xff]
        %v1441 = vld [vmem:[%s1431 + $0x48] sm:$0xff]
        %v1442 = vld [vmem:[%s1431 + $0x50] sm:$0xff]
        %v1443 = vld [vmem:[%s1431 + $0x58] sm:$0xff]
        %v1444 = vld [vmem:[%s1431 + $0x60] sm:$0xff]
        %v1445 = vld [vmem:[%s1431 + $0x68] sm:$0xff]
        %v1446 = vld [vmem:[%s1431 + $0x70] sm:$0xff]
        %v1447 = vld [vmem:[%s1431 + $0x78] sm:$0xff]
        %v1448 = vld [vmem:[%s1431 + $0x80] sm:$0xff]
        %v1449 = vld [vmem:[%s1431 + $0x88] sm:$0xff]
        %v1450 = vld [vmem:[%s1431 + $0x90] sm:$0xff]
        %v1451 = vld [vmem:[%s1431 + $0x98] sm:$0xff]
        %v1452 = vld [vmem:[%s1431 + $0xa0] sm:$0xff]
        %v1453 = vld [vmem:[%s1431 + $0xa8] sm:$0xff]
        %v1454 = vld [vmem:[%s1431 + $0xb0] sm:$0xff]
        %v1455 = vld [vmem:[%s1431 + $0xb8] sm:$0xff]
        %v1456 = vld [vmem:[%s1431 + $0xc0] sm:$0xff]
        %v1457 = vld [vmem:[%s1431 + $0xc8] sm:$0xff]
        %v1458 = vld [vmem:[%s1431 + $0xd0] sm:$0xff]
        %v1459 = vld [vmem:[%s1431 + $0xd8] sm:$0xff]
        %v1460 = vld [vmem:[%s1431 + $0xe0] sm:$0xff]
        %v1461 = vld [vmem:[%s1431 + $0xe8] sm:$0xff]
        %v1462 = vld [vmem:[%s1431 + $0xf0] sm:$0xff]
        %v1463 = vld [vmem:[%s1431 + $0xf8] sm:$0xff]
        %v1466 = vrot.slane %v1397, 1
        %v1467 = vrot.slane %v1398, 1
        %v1468 = vsel %vm637, %v1466, %v1467
        %1471 = vmatpush.msra.mxu0 %v1462
        %1472 = vmatpush.msra.mxu0 %v1460
        %1473 = vmatpush.msra.mxu0 %v1458
        %1474 = vmatpush.msra.mxu0 %v1456
        %1475 = vmatpush.msra.mxu0 %v1454
        %1476 = vmatpush.msra.mxu0 %v1452
        %1477 = vmatpush.msra.mxu0 %v1450
        %1478 = vmatpush.msra.mxu0 %v1448
        %1479 = vmatpush.msra.mxu0 %v1446
        %1480 = vmatpush.msra.mxu0 %v1444
        %1481 = vmatpush.msra.mxu0 %v1442
        %1482 = vmatpush.msra.mxu0 %v1440
        %1483 = vmatpush.msra.mxu0 %v1438
        %1484 = vmatpush.msra.mxu0 %v1436
        %1485 = vmatpush.msra.mxu0 %v1434
        %1486 = vmatpush.msra.mxu0 %v1432
        %1487 = vmatmul.f32.gmra.mxu0 %v1468
        %v1488 = vpop.f32.mrf.mxu0
        %v1489 = vadd.f32 0.0, %v1488
        %1490 = vmatmul.f32.gmra.mxu0 %v1467
        %v1491 = vpop.f32.mrf.mxu0
        %v1492 = vadd.f32 0.0, %v1491
        %1493 = vdwg.mxu0
        %1494 = vmatpush.msra.mxu0 %v1463
        %1495 = vmatpush.msra.mxu0 %v1461
        %1496 = vmatpush.msra.mxu0 %v1459
        %1497 = vmatpush.msra.mxu0 %v1457
        %1498 = vmatpush.msra.mxu0 %v1455
        %1499 = vmatpush.msra.mxu0 %v1453
        %1500 = vmatpush.msra.mxu0 %v1451
        %1501 = vmatpush.msra.mxu0 %v1449
        %1502 = vmatpush.msra.mxu0 %v1447
        %1503 = vmatpush.msra.mxu0 %v1445
        %1504 = vmatpush.msra.mxu0 %v1443
        %1505 = vmatpush.msra.mxu0 %v1441
        %1506 = vmatpush.msra.mxu0 %v1439
        %1507 = vmatpush.msra.mxu0 %v1437
        %1508 = vmatpush.msra.mxu0 %v1435
        %1509 = vmatpush.msra.mxu0 %v1433
        %1510 = vmatmul.f32.gmra.mxu0 %v1468
        %v1511 = vpop.f32.mrf.mxu0
        %v1512 = vadd.f32 0.0, %v1511
        %1513 = vmatmul.f32.gmra.mxu0 %v1467
        %v1514 = vpop.f32.mrf.mxu0
        %v1515 = vadd.f32 0.0, %v1514
        %1516 = vdwg.mxu0
        %1517 = vmatpush.msra.mxu0 %v1429
        %1518 = vmatpush.msra.mxu0 %v1427
        %1519 = vmatpush.msra.mxu0 %v1425
        %1520 = vmatpush.msra.mxu0 %v1423
        %1521 = vmatpush.msra.mxu0 %v1421
        %1522 = vmatpush.msra.mxu0 %v1419
        %1523 = vmatpush.msra.mxu0 %v1417
        %1524 = vmatpush.msra.mxu0 %v1415
        %1525 = vmatpush.msra.mxu0 %v1413
        %1526 = vmatpush.msra.mxu0 %v1411
        %1527 = vmatpush.msra.mxu0 %v1409
        %1528 = vmatpush.msra.mxu0 %v1407
        %1529 = vmatpush.msra.mxu0 %v1405
        %1530 = vmatpush.msra.mxu0 %v1403
        %1531 = vmatpush.msra.mxu0 %v1401
        %1532 = vmatpush.msra.mxu0 %v1399
        %1533 = vmatmul.f32.gmra.mxu0 %v1397
        %v1534 = vpop.f32.mrf.mxu0
        %v1535 = vadd.f32 %v1489, %v1534
        %1536 = vmatmul.f32.gmra.mxu0 %v1398
        %v1537 = vpop.f32.mrf.mxu0
        %v1538 = vadd.f32 %v1492, %v1537
        %1539 = vdwg.mxu0
        %1540 = vmatpush.msra.mxu0 %v1430
        %1541 = vmatpush.msra.mxu0 %v1428
        %1542 = vmatpush.msra.mxu0 %v1426
        %1543 = vmatpush.msra.mxu0 %v1424
        %1544 = vmatpush.msra.mxu0 %v1422
        %1545 = vmatpush.msra.mxu0 %v1420
        %1546 = vmatpush.msra.mxu0 %v1418
        %1547 = vmatpush.msra.mxu0 %v1416
        %1548 = vmatpush.msra.mxu0 %v1414
        %1549 = vmatpush.msra.mxu0 %v1412
        %1550 = vmatpush.msra.mxu0 %v1410
        %1551 = vmatpush.msra.mxu0 %v1408
        %1552 = vmatpush.msra.mxu0 %v1406
        %1553 = vmatpush.msra.mxu0 %v1404
        %1554 = vmatpush.msra.mxu0 %v1402
        %1555 = vmatpush.msra.mxu0 %v1400
        %1556 = vmatmul.f32.gmra.mxu0 %v1397
        %v1557 = vpop.f32.mrf.mxu0
        %v1558 = vadd.f32 %v1512, %v1557
        %1559 = vmatmul.f32.gmra.mxu0 %v1398
        %v1560 = vpop.f32.mrf.mxu0
        %v1561 = vadd.f32 %v1515, %v1560
        %1562 = vdwg.mxu0
        %s1563 = scalar_lea.vmem [#allocation7], 512
        %v1564 = vld [vmem:[%s1563] sm:$0xff]
        %v1565 = vld [vmem:[%s1563 + $0x8] sm:$0xff]
        %v1566 = vld [vmem:[%s1563 + $0x10] sm:$0xff]
        %v1567 = vld [vmem:[%s1563 + $0x18] sm:$0xff]
        %v1568 = vld [vmem:[%s1563 + $0x20] sm:$0xff]
        %v1569 = vld [vmem:[%s1563 + $0x28] sm:$0xff]
        %v1570 = vld [vmem:[%s1563 + $0x30] sm:$0xff]
        %v1571 = vld [vmem:[%s1563 + $0x38] sm:$0xff]
        %v1572 = vld [vmem:[%s1563 + $0x40] sm:$0xff]
        %v1573 = vld [vmem:[%s1563 + $0x48] sm:$0xff]
        %v1574 = vld [vmem:[%s1563 + $0x50] sm:$0xff]
        %v1575 = vld [vmem:[%s1563 + $0x58] sm:$0xff]
        %v1576 = vld [vmem:[%s1563 + $0x60] sm:$0xff]
        %v1577 = vld [vmem:[%s1563 + $0x68] sm:$0xff]
        %v1578 = vld [vmem:[%s1563 + $0x70] sm:$0xff]
        %v1579 = vld [vmem:[%s1563 + $0x78] sm:$0xff]
        %v1580 = vld [vmem:[%s1563 + $0x80] sm:$0xff]
        %v1581 = vld [vmem:[%s1563 + $0x88] sm:$0xff]
        %v1582 = vld [vmem:[%s1563 + $0x90] sm:$0xff]
        %v1583 = vld [vmem:[%s1563 + $0x98] sm:$0xff]
        %v1584 = vld [vmem:[%s1563 + $0xa0] sm:$0xff]
        %v1585 = vld [vmem:[%s1563 + $0xa8] sm:$0xff]
        %v1586 = vld [vmem:[%s1563 + $0xb0] sm:$0xff]
        %v1587 = vld [vmem:[%s1563 + $0xb8] sm:$0xff]
        %v1588 = vld [vmem:[%s1563 + $0xc0] sm:$0xff]
        %v1589 = vld [vmem:[%s1563 + $0xc8] sm:$0xff]
        %v1590 = vld [vmem:[%s1563 + $0xd0] sm:$0xff]
        %v1591 = vld [vmem:[%s1563 + $0xd8] sm:$0xff]
        %v1592 = vld [vmem:[%s1563 + $0xe0] sm:$0xff]
        %v1593 = vld [vmem:[%s1563 + $0xe8] sm:$0xff]
        %v1594 = vld [vmem:[%s1563 + $0xf0] sm:$0xff]
        %v1595 = vld [vmem:[%s1563 + $0xf8] sm:$0xff]
        %v1596 = vrot.slane %v1397, 2
        %v1597 = vrot.slane %v1398, 2
        %v1598 = vsel %vm798, %v1596, %v1597
        %1601 = vmatpush.msra.mxu0 %v1594
        %1602 = vmatpush.msra.mxu0 %v1592
        %1603 = vmatpush.msra.mxu0 %v1590
        %1604 = vmatpush.msra.mxu0 %v1588
        %1605 = vmatpush.msra.mxu0 %v1586
        %1606 = vmatpush.msra.mxu0 %v1584
        %1607 = vmatpush.msra.mxu0 %v1582
        %1608 = vmatpush.msra.mxu0 %v1580
        %1609 = vmatpush.msra.mxu0 %v1578
        %1610 = vmatpush.msra.mxu0 %v1576
        %1611 = vmatpush.msra.mxu0 %v1574
        %1612 = vmatpush.msra.mxu0 %v1572
        %1613 = vmatpush.msra.mxu0 %v1570
        %1614 = vmatpush.msra.mxu0 %v1568
        %1615 = vmatpush.msra.mxu0 %v1566
        %1616 = vmatpush.msra.mxu0 %v1564
        %1617 = vmatmul.f32.gmra.mxu0 %v1598
        %v1618 = vpop.f32.mrf.mxu0
        %v1619 = vadd.f32 0.0, %v1618
        %1620 = vmatmul.f32.gmra.mxu0 %v1597
        %v1621 = vpop.f32.mrf.mxu0
        %v1622 = vadd.f32 0.0, %v1621
        %1623 = vdwg.mxu0
        %1624 = vmatpush.msra.mxu0 %v1595
        %1625 = vmatpush.msra.mxu0 %v1593
        %1626 = vmatpush.msra.mxu0 %v1591
        %1627 = vmatpush.msra.mxu0 %v1589
        %1628 = vmatpush.msra.mxu0 %v1587
        %1629 = vmatpush.msra.mxu0 %v1585
        %1630 = vmatpush.msra.mxu0 %v1583
        %1631 = vmatpush.msra.mxu0 %v1581
        %1632 = vmatpush.msra.mxu0 %v1579
        %1633 = vmatpush.msra.mxu0 %v1577
        %1634 = vmatpush.msra.mxu0 %v1575
        %1635 = vmatpush.msra.mxu0 %v1573
        %1636 = vmatpush.msra.mxu0 %v1571
        %1637 = vmatpush.msra.mxu0 %v1569
        %1638 = vmatpush.msra.mxu0 %v1567
        %1639 = vmatpush.msra.mxu0 %v1565
        %1640 = vmatmul.f32.gmra.mxu0 %v1598
        %v1641 = vpop.f32.mrf.mxu0
        %v1642 = vadd.f32 0.0, %v1641
        %1643 = vmatmul.f32.gmra.mxu0 %v1597
        %v1644 = vpop.f32.mrf.mxu0
        %v1645 = vadd.f32 0.0, %v1644
        %1646 = vdwg.mxu0
        %v1647 = vadd.f32 %v1535, %v1619
        %v1648 = vadd.f32 %v1558, %v1642
        %v1649 = vadd.f32 %v1538, %v1622
        %v1650 = vadd.f32 %v1561, %v1645
        %s1651 = scalar_lea.vmem [#allocation7], 768
        %v1652 = vld [vmem:[%s1651] sm:$0xff]
        %v1653 = vld [vmem:[%s1651 + $0x8] sm:$0xff]
        %v1654 = vld [vmem:[%s1651 + $0x10] sm:$0xff]
        %v1655 = vld [vmem:[%s1651 + $0x18] sm:$0xff]
        %v1656 = vld [vmem:[%s1651 + $0x20] sm:$0xff]
        %v1657 = vld [vmem:[%s1651 + $0x28] sm:$0xff]
        %v1658 = vld [vmem:[%s1651 + $0x30] sm:$0xff]
        %v1659 = vld [vmem:[%s1651 + $0x38] sm:$0xff]
        %v1660 = vld [vmem:[%s1651 + $0x40] sm:$0xff]
        %v1661 = vld [vmem:[%s1651 + $0x48] sm:$0xff]
        %v1662 = vld [vmem:[%s1651 + $0x50] sm:$0xff]
        %v1663 = vld [vmem:[%s1651 + $0x58] sm:$0xff]
        %v1664 = vld [vmem:[%s1651 + $0x60] sm:$0xff]
        %v1665 = vld [vmem:[%s1651 + $0x68] sm:$0xff]
        %v1666 = vld [vmem:[%s1651 + $0x70] sm:$0xff]
        %v1667 = vld [vmem:[%s1651 + $0x78] sm:$0xff]
        %v1668 = vld [vmem:[%s1651 + $0x80] sm:$0xff]
        %v1669 = vld [vmem:[%s1651 + $0x88] sm:$0xff]
        %v1670 = vld [vmem:[%s1651 + $0x90] sm:$0xff]
        %v1671 = vld [vmem:[%s1651 + $0x98] sm:$0xff]
        %v1672 = vld [vmem:[%s1651 + $0xa0] sm:$0xff]
        %v1673 = vld [vmem:[%s1651 + $0xa8] sm:$0xff]
        %v1674 = vld [vmem:[%s1651 + $0xb0] sm:$0xff]
        %v1675 = vld [vmem:[%s1651 + $0xb8] sm:$0xff]
        %v1676 = vld [vmem:[%s1651 + $0xc0] sm:$0xff]
        %v1677 = vld [vmem:[%s1651 + $0xc8] sm:$0xff]
        %v1678 = vld [vmem:[%s1651 + $0xd0] sm:$0xff]
        %v1679 = vld [vmem:[%s1651 + $0xd8] sm:$0xff]
        %v1680 = vld [vmem:[%s1651 + $0xe0] sm:$0xff]
        %v1681 = vld [vmem:[%s1651 + $0xe8] sm:$0xff]
        %v1682 = vld [vmem:[%s1651 + $0xf0] sm:$0xff]
        %v1683 = vld [vmem:[%s1651 + $0xf8] sm:$0xff]
        %v1684 = vrot.slane %v1397, 3
        %v1685 = vrot.slane %v1398, 3
        %v1686 = vsel %vm909, %v1684, %v1685
        %1689 = vmatpush.msra.mxu0 %v1682
        %1690 = vmatpush.msra.mxu0 %v1680
        %1691 = vmatpush.msra.mxu0 %v1678
        %1692 = vmatpush.msra.mxu0 %v1676
        %1693 = vmatpush.msra.mxu0 %v1674
        %1694 = vmatpush.msra.mxu0 %v1672
        %1695 = vmatpush.msra.mxu0 %v1670
        %1696 = vmatpush.msra.mxu0 %v1668
        %1697 = vmatpush.msra.mxu0 %v1666
        %1698 = vmatpush.msra.mxu0 %v1664
        %1699 = vmatpush.msra.mxu0 %v1662
        %1700 = vmatpush.msra.mxu0 %v1660
        %1701 = vmatpush.msra.mxu0 %v1658
        %1702 = vmatpush.msra.mxu0 %v1656
        %1703 = vmatpush.msra.mxu0 %v1654
        %1704 = vmatpush.msra.mxu0 %v1652
        %1705 = vmatmul.f32.gmra.mxu0 %v1686
        %v1706 = vpop.f32.mrf.mxu0
        %v1707 = vadd.f32 0.0, %v1706
        %1708 = vmatmul.f32.gmra.mxu0 %v1685
        %v1709 = vpop.f32.mrf.mxu0
        %v1710 = vadd.f32 0.0, %v1709
        %1711 = vdwg.mxu0
        %1712 = vmatpush.msra.mxu0 %v1683
        %1713 = vmatpush.msra.mxu0 %v1681
        %1714 = vmatpush.msra.mxu0 %v1679
        %1715 = vmatpush.msra.mxu0 %v1677
        %1716 = vmatpush.msra.mxu0 %v1675
        %1717 = vmatpush.msra.mxu0 %v1673
        %1718 = vmatpush.msra.mxu0 %v1671
        %1719 = vmatpush.msra.mxu0 %v1669
        %1720 = vmatpush.msra.mxu0 %v1667
        %1721 = vmatpush.msra.mxu0 %v1665
        %1722 = vmatpush.msra.mxu0 %v1663
        %1723 = vmatpush.msra.mxu0 %v1661
        %1724 = vmatpush.msra.mxu0 %v1659
        %1725 = vmatpush.msra.mxu0 %v1657
        %1726 = vmatpush.msra.mxu0 %v1655
        %1727 = vmatpush.msra.mxu0 %v1653
        %1728 = vmatmul.f32.gmra.mxu0 %v1686
        %v1729 = vpop.f32.mrf.mxu0
        %v1730 = vadd.f32 0.0, %v1729
        %1731 = vmatmul.f32.gmra.mxu0 %v1685
        %v1732 = vpop.f32.mrf.mxu0
        %v1733 = vadd.f32 0.0, %v1732
        %1734 = vdwg.mxu0
        %v1735 = vadd.f32 %v1647, %v1707
        %v1736 = vadd.f32 %v1648, %v1730
        %v1737 = vadd.f32 %v1649, %v1710
        %v1738 = vadd.f32 %v1650, %v1733
        %s1739 = scalar_lea.vmem [#allocation7], 1024
        %v1740 = vld [vmem:[%s1739] sm:$0xff]
        %v1741 = vld [vmem:[%s1739 + $0x8] sm:$0xff]
        %v1742 = vld [vmem:[%s1739 + $0x10] sm:$0xff]
        %v1743 = vld [vmem:[%s1739 + $0x18] sm:$0xff]
        %v1744 = vld [vmem:[%s1739 + $0x20] sm:$0xff]
        %v1745 = vld [vmem:[%s1739 + $0x28] sm:$0xff]
        %v1746 = vld [vmem:[%s1739 + $0x30] sm:$0xff]
        %v1747 = vld [vmem:[%s1739 + $0x38] sm:$0xff]
        %v1748 = vld [vmem:[%s1739 + $0x40] sm:$0xff]
        %v1749 = vld [vmem:[%s1739 + $0x48] sm:$0xff]
        %v1750 = vld [vmem:[%s1739 + $0x50] sm:$0xff]
        %v1751 = vld [vmem:[%s1739 + $0x58] sm:$0xff]
        %v1752 = vld [vmem:[%s1739 + $0x60] sm:$0xff]
        %v1753 = vld [vmem:[%s1739 + $0x68] sm:$0xff]
        %v1754 = vld [vmem:[%s1739 + $0x70] sm:$0xff]
        %v1755 = vld [vmem:[%s1739 + $0x78] sm:$0xff]
        %v1756 = vld [vmem:[%s1739 + $0x80] sm:$0xff]
        %v1757 = vld [vmem:[%s1739 + $0x88] sm:$0xff]
        %v1758 = vld [vmem:[%s1739 + $0x90] sm:$0xff]
        %v1759 = vld [vmem:[%s1739 + $0x98] sm:$0xff]
        %v1760 = vld [vmem:[%s1739 + $0xa0] sm:$0xff]
        %v1761 = vld [vmem:[%s1739 + $0xa8] sm:$0xff]
        %v1762 = vld [vmem:[%s1739 + $0xb0] sm:$0xff]
        %v1763 = vld [vmem:[%s1739 + $0xb8] sm:$0xff]
        %v1764 = vld [vmem:[%s1739 + $0xc0] sm:$0xff]
        %v1765 = vld [vmem:[%s1739 + $0xc8] sm:$0xff]
        %v1766 = vld [vmem:[%s1739 + $0xd0] sm:$0xff]
        %v1767 = vld [vmem:[%s1739 + $0xd8] sm:$0xff]
        %v1768 = vld [vmem:[%s1739 + $0xe0] sm:$0xff]
        %v1769 = vld [vmem:[%s1739 + $0xe8] sm:$0xff]
        %v1770 = vld [vmem:[%s1739 + $0xf0] sm:$0xff]
        %v1771 = vld [vmem:[%s1739 + $0xf8] sm:$0xff]
        %v1772 = vrot.slane %v1397, 4
        %v1773 = vrot.slane %v1398, 4
        %v1774 = vsel %vm1020, %v1772, %v1773
        %1777 = vmatpush.msra.mxu0 %v1770
        %1778 = vmatpush.msra.mxu0 %v1768
        %1779 = vmatpush.msra.mxu0 %v1766
        %1780 = vmatpush.msra.mxu0 %v1764
        %1781 = vmatpush.msra.mxu0 %v1762
        %1782 = vmatpush.msra.mxu0 %v1760
        %1783 = vmatpush.msra.mxu0 %v1758
        %1784 = vmatpush.msra.mxu0 %v1756
        %1785 = vmatpush.msra.mxu0 %v1754
        %1786 = vmatpush.msra.mxu0 %v1752
        %1787 = vmatpush.msra.mxu0 %v1750
        %1788 = vmatpush.msra.mxu0 %v1748
        %1789 = vmatpush.msra.mxu0 %v1746
        %1790 = vmatpush.msra.mxu0 %v1744
        %1791 = vmatpush.msra.mxu0 %v1742
        %1792 = vmatpush.msra.mxu0 %v1740
        %1793 = vmatmul.f32.gmra.mxu0 %v1774
        %v1794 = vpop.f32.mrf.mxu0
        %v1795 = vadd.f32 0.0, %v1794
        %1796 = vmatmul.f32.gmra.mxu0 %v1773
        %v1797 = vpop.f32.mrf.mxu0
        %v1798 = vadd.f32 0.0, %v1797
        %1799 = vdwg.mxu0
        %1800 = vmatpush.msra.mxu0 %v1771
        %1801 = vmatpush.msra.mxu0 %v1769
        %1802 = vmatpush.msra.mxu0 %v1767
        %1803 = vmatpush.msra.mxu0 %v1765
        %1804 = vmatpush.msra.mxu0 %v1763
        %1805 = vmatpush.msra.mxu0 %v1761
        %1806 = vmatpush.msra.mxu0 %v1759
        %1807 = vmatpush.msra.mxu0 %v1757
        %1808 = vmatpush.msra.mxu0 %v1755
        %1809 = vmatpush.msra.mxu0 %v1753
        %1810 = vmatpush.msra.mxu0 %v1751
        %1811 = vmatpush.msra.mxu0 %v1749
        %1812 = vmatpush.msra.mxu0 %v1747
        %1813 = vmatpush.msra.mxu0 %v1745
        %1814 = vmatpush.msra.mxu0 %v1743
        %1815 = vmatpush.msra.mxu0 %v1741
        %1816 = vmatmul.f32.gmra.mxu0 %v1774
        %v1817 = vpop.f32.mrf.mxu0
        %v1818 = vadd.f32 0.0, %v1817
        %1819 = vmatmul.f32.gmra.mxu0 %v1773
        %v1820 = vpop.f32.mrf.mxu0
        %v1821 = vadd.f32 0.0, %v1820
        %1822 = vdwg.mxu0
        %v1823 = vadd.f32 %v1735, %v1795
        %v1824 = vadd.f32 %v1736, %v1818
        %v1825 = vadd.f32 %v1737, %v1798
        %v1826 = vadd.f32 %v1738, %v1821
        %v1827 = vld [vmem:[%s6] sm:$0x3]
        %v1829 = vperm.slane %v1827, 0
        %v1830 = vperm.slane %v1827, 1
        %v1833 = vadd.f32 %v1823, %v1829
        %v1834 = vadd.f32 %v1824, %v1830
        %v1835 = vadd.f32 %v1825, %v1829
        %v1836 = vadd.f32 %v1826, %v1830
        %v1837 = vmax.f32 %v1833, 0.0
        %v1838 = vmax.f32 %v1834, 0.0
        %v1839 = vmax.f32 %v1835, 0.0
        %v1840 = vmax.f32 %v1836, 0.0
        %v1841 = vld [vmem:[%s7] sm:$0x1f]
        %vm1842 = vcmask 80896
        %v1844 = vsel %vm1842, %v1841, 0
        %vm1846 = vcmask 1041408
        %v1848 = vsel %vm1846, %v1839, 0
        %v1851 = vsel %vm1846, %v1840, 0
        %1853 = vmatpush.msra.mxu0 0.0
        %1854 = vmatpush.msra.mxu0 0.0
        %1855 = vmatpush.msra.mxu0 0.0
        %1856 = vmatpush.msra.mxu0 0.0
        %1857 = vmatpush.msra.mxu0 0.0
        %1858 = vmatpush.msra.mxu0 0.0
        %1859 = vmatpush.msra.mxu0 0.0
        %1860 = vmatpush.msra.mxu0 0.0
        %1861 = vmatpush.msra.mxu0 0.0
        %1862 = vmatpush.msra.mxu0 0.0
        %1863 = vmatpush.msra.mxu0 0.0
        %1864 = vmatpush.msra.mxu0 0.0
        %1865 = vmatpush.msra.mxu0 0.0
        %1866 = vmatpush.msra.mxu0 0.0
        %1867 = vmatpush.msra.mxu0 %v1848
        %1868 = vmatpush.msra.mxu0 %v1837
        %1869 = vmatmul.f32.gmra.mxu0 %v1844
        %v1870 = vpop.f32.mrf.mxu0
        %v1871 = vadd.f32 0.0, %v1870
        %1872 = vdwg.mxu0
        %1873 = vmatpush.msra.mxu0 0.0
        %1874 = vmatpush.msra.mxu0 0.0
        %1875 = vmatpush.msra.mxu0 0.0
        %1876 = vmatpush.msra.mxu0 0.0
        %1877 = vmatpush.msra.mxu0 0.0
        %1878 = vmatpush.msra.mxu0 0.0
        %1879 = vmatpush.msra.mxu0 0.0
        %1880 = vmatpush.msra.mxu0 0.0
        %1881 = vmatpush.msra.mxu0 0.0
        %1882 = vmatpush.msra.mxu0 0.0
        %1883 = vmatpush.msra.mxu0 0.0
        %1884 = vmatpush.msra.mxu0 0.0
        %1885 = vmatpush.msra.mxu0 0.0
        %1886 = vmatpush.msra.mxu0 0.0
        %1887 = vmatpush.msra.mxu0 %v1851
        %1888 = vmatpush.msra.mxu0 %v1838
        %1889 = vmatmul.f32.gmra.mxu0 %v1844
        %v1890 = vpop.f32.mrf.mxu0
        %v1891 = vadd.f32 0.0, %v1890
        %1892 = vdwg.mxu0
        %s1893 = scalar_lea.vmem %s7, 8
        %v1894 = vld [vmem:[%s1893] sm:$0x1f]
        %v1896 = vsel %vm1842, %v1894, 0
        %1898 = vmatpush.msra.mxu0 0.0
        %1899 = vmatpush.msra.mxu0 0.0
        %1900 = vmatpush.msra.mxu0 0.0
        %1901 = vmatpush.msra.mxu0 0.0
        %1902 = vmatpush.msra.mxu0 0.0
        %1903 = vmatpush.msra.mxu0 0.0
        %1904 = vmatpush.msra.mxu0 0.0
        %1905 = vmatpush.msra.mxu0 0.0
        %1906 = vmatpush.msra.mxu0 0.0
        %1907 = vmatpush.msra.mxu0 0.0
        %1908 = vmatpush.msra.mxu0 0.0
        %1909 = vmatpush.msra.mxu0 0.0
        %1910 = vmatpush.msra.mxu0 0.0
        %1911 = vmatpush.msra.mxu0 0.0
        %1912 = vmatpush.msra.mxu0 %v1848
        %1913 = vmatpush.msra.mxu0 %v1837
        %1914 = vmatmul.f32.gmra.mxu0 %v1896
        %v1915 = vpop.f32.mrf.mxu0
        %v1916 = vadd.f32 0.0, %v1915
        %1917 = vdwg.mxu0
        %1918 = vmatpush.msra.mxu0 0.0
        %1919 = vmatpush.msra.mxu0 0.0
        %1920 = vmatpush.msra.mxu0 0.0
        %1921 = vmatpush.msra.mxu0 0.0
        %1922 = vmatpush.msra.mxu0 0.0
        %1923 = vmatpush.msra.mxu0 0.0
        %1924 = vmatpush.msra.mxu0 0.0
        %1925 = vmatpush.msra.mxu0 0.0
        %1926 = vmatpush.msra.mxu0 0.0
        %1927 = vmatpush.msra.mxu0 0.0
        %1928 = vmatpush.msra.mxu0 0.0
        %1929 = vmatpush.msra.mxu0 0.0
        %1930 = vmatpush.msra.mxu0 0.0
        %1931 = vmatpush.msra.mxu0 0.0
        %1932 = vmatpush.msra.mxu0 %v1851
        %1933 = vmatpush.msra.mxu0 %v1838
        %1934 = vmatmul.f32.gmra.mxu0 %v1896
        %v1935 = vpop.f32.mrf.mxu0
        %v1936 = vadd.f32 0.0, %v1935
        %1937 = vdwg.mxu0
        %v1938 = vmax.f32 %v1871, %v1916
        %v1939 = vmax.f32 %v1891, %v1936
        %v1940 = vld [vmem:[#allocation8] sm:$0xff]
        %v1941 = vld [vmem:[#allocation8 + $0x8] sm:$0xff]
        %v1942 = vld [vmem:[#allocation8 + $0x10] sm:$0xff]
        %v1943 = vld [vmem:[#allocation8 + $0x18] sm:$0xff]
        %v1944 = vld [vmem:[#allocation8 + $0x20] sm:$0xff]
        %v1945 = vld [vmem:[#allocation8 + $0x28] sm:$0xff]
        %v1946 = vld [vmem:[#allocation8 + $0x30] sm:$0xff]
        %v1947 = vld [vmem:[#allocation8 + $0x38] sm:$0xff]
        %v1948 = vld [vmem:[#allocation8 + $0x40] sm:$0xff]
        %v1949 = vld [vmem:[#allocation8 + $0x48] sm:$0xff]
        %v1950 = vld [vmem:[#allocation8 + $0x50] sm:$0xff]
        %v1951 = vld [vmem:[#allocation8 + $0x58] sm:$0xff]
        %v1952 = vld [vmem:[#allocation8 + $0x60] sm:$0xff]
        %v1953 = vld [vmem:[#allocation8 + $0x68] sm:$0xff]
        %v1954 = vld [vmem:[#allocation8 + $0x70] sm:$0xff]
        %v1955 = vld [vmem:[#allocation8 + $0x78] sm:$0xff]
        %v1956 = vld [vmem:[#allocation8 + $0x80] sm:$0xff]
        %v1957 = vld [vmem:[#allocation8 + $0x88] sm:$0xff]
        %v1958 = vld [vmem:[#allocation8 + $0x90] sm:$0xff]
        %v1959 = vld [vmem:[#allocation8 + $0x98] sm:$0xff]
        %v1960 = vld [vmem:[#allocation8 + $0xa0] sm:$0xff]
        %v1961 = vld [vmem:[#allocation8 + $0xa8] sm:$0xff]
        %v1962 = vld [vmem:[#allocation8 + $0xb0] sm:$0xff]
        %v1963 = vld [vmem:[#allocation8 + $0xb8] sm:$0xff]
        %v1964 = vld [vmem:[#allocation8 + $0xc0] sm:$0xff]
        %v1965 = vld [vmem:[#allocation8 + $0xc8] sm:$0xff]
        %v1966 = vld [vmem:[#allocation8 + $0xd0] sm:$0xff]
        %v1967 = vld [vmem:[#allocation8 + $0xd8] sm:$0xff]
        %v1968 = vld [vmem:[#allocation8 + $0xe0] sm:$0xff]
        %v1969 = vld [vmem:[#allocation8 + $0xe8] sm:$0xff]
        %v1970 = vld [vmem:[#allocation8 + $0xf0] sm:$0xff]
        %v1971 = vld [vmem:[#allocation8 + $0xf8] sm:$0xff]
        %1972 = vmatpush.msra.mxu0 %v1955
        %1973 = vmatpush.msra.mxu0 %v1954
        %1974 = vmatpush.msra.mxu0 %v1953
        %1975 = vmatpush.msra.mxu0 %v1952
        %1976 = vmatpush.msra.mxu0 %v1951
        %1977 = vmatpush.msra.mxu0 %v1950
        %1978 = vmatpush.msra.mxu0 %v1949
        %1979 = vmatpush.msra.mxu0 %v1948
        %1980 = vmatpush.msra.mxu0 %v1947
        %1981 = vmatpush.msra.mxu0 %v1946
        %1982 = vmatpush.msra.mxu0 %v1945
        %1983 = vmatpush.msra.mxu0 %v1944
        %1984 = vmatpush.msra.mxu0 %v1943
        %1985 = vmatpush.msra.mxu0 %v1942
        %1986 = vmatpush.msra.mxu0 %v1941
        %1987 = vmatpush.msra.mxu0 %v1940
        %1988 = vmatmul.f32.gmra.mxu0 %v1938
        %v1989 = vpop.f32.mrf.mxu0
        %v1990 = vadd.f32 0.0, %v1989
        %1991 = vdwg.mxu0
        %1992 = vmatpush.msra.mxu0 %v1971
        %1993 = vmatpush.msra.mxu0 %v1970
        %1994 = vmatpush.msra.mxu0 %v1969
        %1995 = vmatpush.msra.mxu0 %v1968
        %1996 = vmatpush.msra.mxu0 %v1967
        %1997 = vmatpush.msra.mxu0 %v1966
        %1998 = vmatpush.msra.mxu0 %v1965
        %1999 = vmatpush.msra.mxu0 %v1964
        %2000 = vmatpush.msra.mxu0 %v1963
        %2001 = vmatpush.msra.mxu0 %v1962
        %2002 = vmatpush.msra.mxu0 %v1961
        %2003 = vmatpush.msra.mxu0 %v1960
        %2004 = vmatpush.msra.mxu0 %v1959
        %2005 = vmatpush.msra.mxu0 %v1958
        %2006 = vmatpush.msra.mxu0 %v1957
        %2007 = vmatpush.msra.mxu0 %v1956
        %2008 = vmatmul.f32.gmra.mxu0 %v1939
        %v2009 = vpop.f32.mrf.mxu0
        %v2010 = vadd.f32 %v1990, %v2009
        %2011 = vdwg.mxu0
        %s2012 = scalar_lea.vmem [#allocation8], 256
        %v2013 = vld [vmem:[%s2012] sm:$0xff]
        %v2014 = vld [vmem:[%s2012 + $0x8] sm:$0xff]
        %v2015 = vld [vmem:[%s2012 + $0x10] sm:$0xff]
        %v2016 = vld [vmem:[%s2012 + $0x18] sm:$0xff]
        %v2017 = vld [vmem:[%s2012 + $0x20] sm:$0xff]
        %v2018 = vld [vmem:[%s2012 + $0x28] sm:$0xff]
        %v2019 = vld [vmem:[%s2012 + $0x30] sm:$0xff]
        %v2020 = vld [vmem:[%s2012 + $0x38] sm:$0xff]
        %v2021 = vld [vmem:[%s2012 + $0x40] sm:$0xff]
        %v2022 = vld [vmem:[%s2012 + $0x48] sm:$0xff]
        %v2023 = vld [vmem:[%s2012 + $0x50] sm:$0xff]
        %v2024 = vld [vmem:[%s2012 + $0x58] sm:$0xff]
        %v2025 = vld [vmem:[%s2012 + $0x60] sm:$0xff]
        %v2026 = vld [vmem:[%s2012 + $0x68] sm:$0xff]
        %v2027 = vld [vmem:[%s2012 + $0x70] sm:$0xff]
        %v2028 = vld [vmem:[%s2012 + $0x78] sm:$0xff]
        %v2029 = vld [vmem:[%s2012 + $0x80] sm:$0xff]
        %v2030 = vld [vmem:[%s2012 + $0x88] sm:$0xff]
        %v2031 = vld [vmem:[%s2012 + $0x90] sm:$0xff]
        %v2032 = vld [vmem:[%s2012 + $0x98] sm:$0xff]
        %v2033 = vld [vmem:[%s2012 + $0xa0] sm:$0xff]
        %v2034 = vld [vmem:[%s2012 + $0xa8] sm:$0xff]
        %v2035 = vld [vmem:[%s2012 + $0xb0] sm:$0xff]
        %v2036 = vld [vmem:[%s2012 + $0xb8] sm:$0xff]
        %v2037 = vld [vmem:[%s2012 + $0xc0] sm:$0xff]
        %v2038 = vld [vmem:[%s2012 + $0xc8] sm:$0xff]
        %v2039 = vld [vmem:[%s2012 + $0xd0] sm:$0xff]
        %v2040 = vld [vmem:[%s2012 + $0xd8] sm:$0xff]
        %v2041 = vld [vmem:[%s2012 + $0xe0] sm:$0xff]
        %v2042 = vld [vmem:[%s2012 + $0xe8] sm:$0xff]
        %v2043 = vld [vmem:[%s2012 + $0xf0] sm:$0xff]
        %v2044 = vld [vmem:[%s2012 + $0xf8] sm:$0xff]
        %2045 = vmatpush.msra.mxu0 %v2028
        %2046 = vmatpush.msra.mxu0 %v2027
        %2047 = vmatpush.msra.mxu0 %v2026
        %2048 = vmatpush.msra.mxu0 %v2025
        %2049 = vmatpush.msra.mxu0 %v2024
        %2050 = vmatpush.msra.mxu0 %v2023
        %2051 = vmatpush.msra.mxu0 %v2022
        %2052 = vmatpush.msra.mxu0 %v2021
        %2053 = vmatpush.msra.mxu0 %v2020
        %2054 = vmatpush.msra.mxu0 %v2019
        %2055 = vmatpush.msra.mxu0 %v2018
        %2056 = vmatpush.msra.mxu0 %v2017
        %2057 = vmatpush.msra.mxu0 %v2016
        %2058 = vmatpush.msra.mxu0 %v2015
        %2059 = vmatpush.msra.mxu0 %v2014
        %2060 = vmatpush.msra.mxu0 %v2013
        %2061 = vmatmul.f32.gmra.mxu0 %v1938
        %v2062 = vpop.f32.mrf.mxu0
        %v2063 = vadd.f32 0.0, %v2062
        %2064 = vdwg.mxu0
        %2065 = vmatpush.msra.mxu0 %v2044
        %2066 = vmatpush.msra.mxu0 %v2043
        %2067 = vmatpush.msra.mxu0 %v2042
        %2068 = vmatpush.msra.mxu0 %v2041
        %2069 = vmatpush.msra.mxu0 %v2040
        %2070 = vmatpush.msra.mxu0 %v2039
        %2071 = vmatpush.msra.mxu0 %v2038
        %2072 = vmatpush.msra.mxu0 %v2037
        %2073 = vmatpush.msra.mxu0 %v2036
        %2074 = vmatpush.msra.mxu0 %v2035
        %2075 = vmatpush.msra.mxu0 %v2034
        %2076 = vmatpush.msra.mxu0 %v2033
        %2077 = vmatpush.msra.mxu0 %v2032
        %2078 = vmatpush.msra.mxu0 %v2031
        %2079 = vmatpush.msra.mxu0 %v2030
        %2080 = vmatpush.msra.mxu0 %v2029
        %2081 = vmatmul.f32.gmra.mxu0 %v1939
        %v2082 = vpop.f32.mrf.mxu0
        %v2083 = vadd.f32 %v2063, %v2082
        %2084 = vdwg.mxu0
        %v2085 = vmax.f32 %v2010, %v2083
        %v2086 = vld [vmem:[%s9] sm:$0xff]
        %v2087 = vld [vmem:[%s9 + $0x8] sm:$0xff]
        %v2088 = vld [vmem:[%s9 + $0x10] sm:$0xff]
        %v2089 = vld [vmem:[%s9 + $0x18] sm:$0xff]
        %v2090 = vld [vmem:[%s9 + $0x20] sm:$0xff]
        %v2091 = vld [vmem:[%s9 + $0x28] sm:$0xff]
        %v2092 = vld [vmem:[%s9 + $0x30] sm:$0xff]
        %v2093 = vld [vmem:[%s9 + $0x38] sm:$0xff]
        %v2094 = vld [vmem:[%s9 + $0x40] sm:$0xff]
        %v2095 = vld [vmem:[%s9 + $0x48] sm:$0xff]
        %v2096 = vld [vmem:[%s9 + $0x50] sm:$0xff]
        %v2097 = vld [vmem:[%s9 + $0x58] sm:$0xff]
        %v2098 = vld [vmem:[%s9 + $0x60] sm:$0xff]
        %v2099 = vld [vmem:[%s9 + $0x68] sm:$0xff]
        %v2100 = vld [vmem:[%s9 + $0x70] sm:$0xff]
        %v2101 = vld [vmem:[%s9 + $0x78] sm:$0xff]
        %s2102 = scalar_lea.vmem %s9, 128
        %v2103 = vld [vmem:[%s2102] sm:$0xff]
        %v2104 = vld [vmem:[%s2102 + $0x8] sm:$0xff]
        %v2105 = vld [vmem:[%s2102 + $0x10] sm:$0xff]
        %v2106 = vld [vmem:[%s2102 + $0x18] sm:$0xff]
        %v2107 = vld [vmem:[%s2102 + $0x20] sm:$0xff]
        %v2108 = vld [vmem:[%s2102 + $0x28] sm:$0xff]
        %v2109 = vld [vmem:[%s2102 + $0x30] sm:$0xff]
        %v2110 = vld [vmem:[%s2102 + $0x38] sm:$0xff]
        %v2111 = vld [vmem:[%s2102 + $0x40] sm:$0xff]
        %v2112 = vld [vmem:[%s2102 + $0x48] sm:$0xff]
        %v2113 = vld [vmem:[%s2102 + $0x50] sm:$0xff]
        %v2114 = vld [vmem:[%s2102 + $0x58] sm:$0xff]
        %v2115 = vld [vmem:[%s2102 + $0x60] sm:$0xff]
        %v2116 = vld [vmem:[%s2102 + $0x68] sm:$0xff]
        %v2117 = vld [vmem:[%s2102 + $0x70] sm:$0xff]
        %v2118 = vld [vmem:[%s2102 + $0x78] sm:$0xff]
        %v2120 = vrot.slane %v2085, 1
        %2122 = vmatpush.msra.mxu0 %v2118
        %2123 = vmatpush.msra.mxu0 %v2117
        %2124 = vmatpush.msra.mxu0 %v2116
        %2125 = vmatpush.msra.mxu0 %v2115
        %2126 = vmatpush.msra.mxu0 %v2114
        %2127 = vmatpush.msra.mxu0 %v2113
        %2128 = vmatpush.msra.mxu0 %v2112
        %2129 = vmatpush.msra.mxu0 %v2111
        %2130 = vmatpush.msra.mxu0 %v2110
        %2131 = vmatpush.msra.mxu0 %v2109
        %2132 = vmatpush.msra.mxu0 %v2108
        %2133 = vmatpush.msra.mxu0 %v2107
        %2134 = vmatpush.msra.mxu0 %v2106
        %2135 = vmatpush.msra.mxu0 %v2105
        %2136 = vmatpush.msra.mxu0 %v2104
        %2137 = vmatpush.msra.mxu0 %v2103
        %2138 = vmatmul.f32.gmra.mxu0 %v2120
        %v2139 = vpop.f32.mrf.mxu0
        %v2140 = vadd.f32 0.0, %v2139
        %2141 = vdwg.mxu0
        %2142 = vmatpush.msra.mxu0 %v2101
        %2143 = vmatpush.msra.mxu0 %v2100
        %2144 = vmatpush.msra.mxu0 %v2099
        %2145 = vmatpush.msra.mxu0 %v2098
        %2146 = vmatpush.msra.mxu0 %v2097
        %2147 = vmatpush.msra.mxu0 %v2096
        %2148 = vmatpush.msra.mxu0 %v2095
        %2149 = vmatpush.msra.mxu0 %v2094
        %2150 = vmatpush.msra.mxu0 %v2093
        %2151 = vmatpush.msra.mxu0 %v2092
        %2152 = vmatpush.msra.mxu0 %v2091
        %2153 = vmatpush.msra.mxu0 %v2090
        %2154 = vmatpush.msra.mxu0 %v2089
        %2155 = vmatpush.msra.mxu0 %v2088
        %2156 = vmatpush.msra.mxu0 %v2087
        %2157 = vmatpush.msra.mxu0 %v2086
        %2158 = vmatmul.f32.gmra.mxu0 %v2085
        %v2159 = vpop.f32.mrf.mxu0
        %v2160 = vadd.f32 %v2140, %v2159
        %2161 = vdwg.mxu0
        %s2162 = scalar_lea.vmem %s9, 256
        %v2163 = vld [vmem:[%s2162] sm:$0xff]
        %v2164 = vld [vmem:[%s2162 + $0x8] sm:$0xff]
        %v2165 = vld [vmem:[%s2162 + $0x10] sm:$0xff]
        %v2166 = vld [vmem:[%s2162 + $0x18] sm:$0xff]
        %v2167 = vld [vmem:[%s2162 + $0x20] sm:$0xff]
        %v2168 = vld [vmem:[%s2162 + $0x28] sm:$0xff]
        %v2169 = vld [vmem:[%s2162 + $0x30] sm:$0xff]
        %v2170 = vld [vmem:[%s2162 + $0x38] sm:$0xff]
        %v2171 = vld [vmem:[%s2162 + $0x40] sm:$0xff]
        %v2172 = vld [vmem:[%s2162 + $0x48] sm:$0xff]
        %v2173 = vld [vmem:[%s2162 + $0x50] sm:$0xff]
        %v2174 = vld [vmem:[%s2162 + $0x58] sm:$0xff]
        %v2175 = vld [vmem:[%s2162 + $0x60] sm:$0xff]
        %v2176 = vld [vmem:[%s2162 + $0x68] sm:$0xff]
        %v2177 = vld [vmem:[%s2162 + $0x70] sm:$0xff]
        %v2178 = vld [vmem:[%s2162 + $0x78] sm:$0xff]
        %v2179 = vrot.slane %v2085, 2
        %2181 = vmatpush.msra.mxu0 %v2178
        %2182 = vmatpush.msra.mxu0 %v2177
        %2183 = vmatpush.msra.mxu0 %v2176
        %2184 = vmatpush.msra.mxu0 %v2175
        %2185 = vmatpush.msra.mxu0 %v2174
        %2186 = vmatpush.msra.mxu0 %v2173
        %2187 = vmatpush.msra.mxu0 %v2172
        %2188 = vmatpush.msra.mxu0 %v2171
        %2189 = vmatpush.msra.mxu0 %v2170
        %2190 = vmatpush.msra.mxu0 %v2169
        %2191 = vmatpush.msra.mxu0 %v2168
        %2192 = vmatpush.msra.mxu0 %v2167
        %2193 = vmatpush.msra.mxu0 %v2166
        %2194 = vmatpush.msra.mxu0 %v2165
        %2195 = vmatpush.msra.mxu0 %v2164
        %2196 = vmatpush.msra.mxu0 %v2163
        %2197 = vmatmul.f32.gmra.mxu0 %v2179
        %v2198 = vpop.f32.mrf.mxu0
        %v2199 = vadd.f32 0.0, %v2198
        %2200 = vdwg.mxu0
        %v2201 = vadd.f32 %v2160, %v2199
        %s2202 = scalar_lea.vmem %s9, 384
        %v2203 = vld [vmem:[%s2202] sm:$0xff]
        %v2204 = vld [vmem:[%s2202 + $0x8] sm:$0xff]
        %v2205 = vld [vmem:[%s2202 + $0x10] sm:$0xff]
        %v2206 = vld [vmem:[%s2202 + $0x18] sm:$0xff]
        %v2207 = vld [vmem:[%s2202 + $0x20] sm:$0xff]
        %v2208 = vld [vmem:[%s2202 + $0x28] sm:$0xff]
        %v2209 = vld [vmem:[%s2202 + $0x30] sm:$0xff]
        %v2210 = vld [vmem:[%s2202 + $0x38] sm:$0xff]
        %v2211 = vld [vmem:[%s2202 + $0x40] sm:$0xff]
        %v2212 = vld [vmem:[%s2202 + $0x48] sm:$0xff]
        %v2213 = vld [vmem:[%s2202 + $0x50] sm:$0xff]
        %v2214 = vld [vmem:[%s2202 + $0x58] sm:$0xff]
        %v2215 = vld [vmem:[%s2202 + $0x60] sm:$0xff]
        %v2216 = vld [vmem:[%s2202 + $0x68] sm:$0xff]
        %v2217 = vld [vmem:[%s2202 + $0x70] sm:$0xff]
        %v2218 = vld [vmem:[%s2202 + $0x78] sm:$0xff]
        %v2219 = vrot.slane %v2085, 3
        %2221 = vmatpush.msra.mxu0 %v2218
        %2222 = vmatpush.msra.mxu0 %v2217
        %2223 = vmatpush.msra.mxu0 %v2216
        %2224 = vmatpush.msra.mxu0 %v2215
        %2225 = vmatpush.msra.mxu0 %v2214
        %2226 = vmatpush.msra.mxu0 %v2213
        %2227 = vmatpush.msra.mxu0 %v2212
        %2228 = vmatpush.msra.mxu0 %v2211
        %2229 = vmatpush.msra.mxu0 %v2210
        %2230 = vmatpush.msra.mxu0 %v2209
        %2231 = vmatpush.msra.mxu0 %v2208
        %2232 = vmatpush.msra.mxu0 %v2207
        %2233 = vmatpush.msra.mxu0 %v2206
        %2234 = vmatpush.msra.mxu0 %v2205
        %2235 = vmatpush.msra.mxu0 %v2204
        %2236 = vmatpush.msra.mxu0 %v2203
        %2237 = vmatmul.f32.gmra.mxu0 %v2219
        %v2238 = vpop.f32.mrf.mxu0
        %v2239 = vadd.f32 0.0, %v2238
        %2240 = vdwg.mxu0
        %v2241 = vadd.f32 %v2201, %v2239
        %s2242 = scalar_lea.vmem %s9, 512
        %v2243 = vld [vmem:[%s2242] sm:$0xff]
        %v2244 = vld [vmem:[%s2242 + $0x8] sm:$0xff]
        %v2245 = vld [vmem:[%s2242 + $0x10] sm:$0xff]
        %v2246 = vld [vmem:[%s2242 + $0x18] sm:$0xff]
        %v2247 = vld [vmem:[%s2242 + $0x20] sm:$0xff]
        %v2248 = vld [vmem:[%s2242 + $0x28] sm:$0xff]
        %v2249 = vld [vmem:[%s2242 + $0x30] sm:$0xff]
        %v2250 = vld [vmem:[%s2242 + $0x38] sm:$0xff]
        %v2251 = vld [vmem:[%s2242 + $0x40] sm:$0xff]
        %v2252 = vld [vmem:[%s2242 + $0x48] sm:$0xff]
        %v2253 = vld [vmem:[%s2242 + $0x50] sm:$0xff]
        %v2254 = vld [vmem:[%s2242 + $0x58] sm:$0xff]
        %v2255 = vld [vmem:[%s2242 + $0x60] sm:$0xff]
        %v2256 = vld [vmem:[%s2242 + $0x68] sm:$0xff]
        %v2257 = vld [vmem:[%s2242 + $0x70] sm:$0xff]
        %v2258 = vld [vmem:[%s2242 + $0x78] sm:$0xff]
        %v2259 = vrot.slane %v2085, 4
        %2261 = vmatpush.msra.mxu0 %v2258
        %2262 = vmatpush.msra.mxu0 %v2257
        %2263 = vmatpush.msra.mxu0 %v2256
        %2264 = vmatpush.msra.mxu0 %v2255
        %2265 = vmatpush.msra.mxu0 %v2254
        %2266 = vmatpush.msra.mxu0 %v2253
        %2267 = vmatpush.msra.mxu0 %v2252
        %2268 = vmatpush.msra.mxu0 %v2251
        %2269 = vmatpush.msra.mxu0 %v2250
        %2270 = vmatpush.msra.mxu0 %v2249
        %2271 = vmatpush.msra.mxu0 %v2248
        %2272 = vmatpush.msra.mxu0 %v2247
        %2273 = vmatpush.msra.mxu0 %v2246
        %2274 = vmatpush.msra.mxu0 %v2245
        %2275 = vmatpush.msra.mxu0 %v2244
        %2276 = vmatpush.msra.mxu0 %v2243
        %2277 = vmatmul.f32.gmra.mxu0 %v2259
        %v2278 = vpop.f32.mrf.mxu0
        %v2279 = vadd.f32 0.0, %v2278
        %2280 = vdwg.mxu0
        %v2281 = vadd.f32 %v2241, %v2279
        %v2282 = vld [vmem:[%s10] sm:$0x1]
        %v2283 = vadd.f32 %v2281, %v2282
        %v2284 = vmax.f32 %v2283, 0.0
        %v2285 = vld [vmem:[%s11] sm:$0xff]
        %v2286 = vld [vmem:[%s11 + $0x8] sm:$0xff]
        %v2287 = vld [vmem:[%s11 + $0x10] sm:$0xff]
        %v2288 = vld [vmem:[%s11 + $0x18] sm:$0xff]
        %v2289 = vld [vmem:[%s11 + $0x20] sm:$0xff]
        %v2290 = vld [vmem:[%s11 + $0x28] sm:$0xff]
        %v2291 = vld [vmem:[%s11 + $0x30] sm:$0xff]
        %v2292 = vld [vmem:[%s11 + $0x38] sm:$0xff]
        %v2293 = vld [vmem:[%s11 + $0x40] sm:$0xff]
        %v2294 = vld [vmem:[%s11 + $0x48] sm:$0xff]
        %v2295 = vld [vmem:[%s11 + $0x50] sm:$0xff]
        %v2296 = vld [vmem:[%s11 + $0x58] sm:$0xff]
        %v2297 = vld [vmem:[%s11 + $0x60] sm:$0xff]
        %v2298 = vld [vmem:[%s11 + $0x68] sm:$0xff]
        %v2299 = vld [vmem:[%s11 + $0x70] sm:$0xff]
        %v2300 = vld [vmem:[%s11 + $0x78] sm:$0xff]
        %v2301 = vld [vmem:[%s12] sm:$0x1]
        %2302 = vmatpush.msra.mxu0 %v2300
        %2303 = vmatpush.msra.mxu0 %v2299
        %2304 = vmatpush.msra.mxu0 %v2298
        %2305 = vmatpush.msra.mxu0 %v2297
        %2306 = vmatpush.msra.mxu0 %v2296
        %2307 = vmatpush.msra.mxu0 %v2295
        %2308 = vmatpush.msra.mxu0 %v2294
        %2309 = vmatpush.msra.mxu0 %v2293
        %2310 = vmatpush.msra.mxu0 %v2292
        %2311 = vmatpush.msra.mxu0 %v2291
        %2312 = vmatpush.msra.mxu0 %v2290
        %2313 = vmatpush.msra.mxu0 %v2289
        %2314 = vmatpush.msra.mxu0 %v2288
        %2315 = vmatpush.msra.mxu0 %v2287
        %2316 = vmatpush.msra.mxu0 %v2286
        %2317 = vmatpush.msra.mxu0 %v2285
        %2318 = vmatmul.f32.gmra.mxu0 %v2284
        %v2319 = vpop.f32.mrf.mxu0
        %v2320 = vadd.f32 %v2301, %v2319
        %2321 = vdwg.mxu0
        %v2322 = vmax.f32 %v2320, 0.0
        %v2323 = vld [vmem:[#allocation10] sm:$0xff]
        %v2324 = vld [vmem:[#allocation10 + $0x8] sm:$0xff]
        %v2325 = vld [vmem:[#allocation10 + $0x10] sm:$0xff]
        %v2326 = vld [vmem:[#allocation10 + $0x18] sm:$0xff]
        %v2327 = vld [vmem:[#allocation10 + $0x20] sm:$0xff]
        %v2328 = vld [vmem:[#allocation10 + $0x28] sm:$0xff]
        %v2329 = vld [vmem:[#allocation10 + $0x30] sm:$0xff]
        %v2330 = vld [vmem:[#allocation10 + $0x38] sm:$0xff]
        %v2331 = vld [vmem:[#allocation10 + $0x40] sm:$0xff]
        %v2332 = vld [vmem:[#allocation10 + $0x48] sm:$0xff]
        %v2333 = vld [vmem:[#allocation10 + $0x50] sm:$0xff]
        %v2334 = vld [vmem:[#allocation10 + $0x58] sm:$0xff]
        %v2335 = vld [vmem:[#allocation10 + $0x60] sm:$0xff]
        %v2336 = vld [vmem:[#allocation10 + $0x68] sm:$0xff]
        %v2337 = vld [vmem:[#allocation10 + $0x70] sm:$0xff]
        %v2338 = vld [vmem:[#allocation10 + $0x78] sm:$0xff]
        %v2339 = vld [vmem:[%s14] sm:$0x1]
        %2340 = vmatpush.msra.mxu0 %v2338
        %2341 = vmatpush.msra.mxu0 %v2337
        %2342 = vmatpush.msra.mxu0 %v2336
        %2343 = vmatpush.msra.mxu0 %v2335
        %2344 = vmatpush.msra.mxu0 %v2334
        %2345 = vmatpush.msra.mxu0 %v2333
        %2346 = vmatpush.msra.mxu0 %v2332
        %2347 = vmatpush.msra.mxu0 %v2331
        %2348 = vmatpush.msra.mxu0 %v2330
        %2349 = vmatpush.msra.mxu0 %v2329
        %2350 = vmatpush.msra.mxu0 %v2328
        %2351 = vmatpush.msra.mxu0 %v2327
        %2352 = vmatpush.msra.mxu0 %v2326
        %2353 = vmatpush.msra.mxu0 %v2325
        %2354 = vmatpush.msra.mxu0 %v2324
        %2355 = vmatpush.msra.mxu0 %v2323
        %2356 = vmatmul.f32.gmra.mxu0 %v2322
        %v2357 = vpop.f32.mrf.mxu0
        %v2358 = vadd.f32 %v2339, %v2357
        %2359 = vdwg.mxu0
        %s2360 = scalar_lea.vmem [#allocation11], %s30
        %2361 = vst [vmem:[%s2360] sm:$0x1] %v2358
        // Predicated region
        $region101: #{net_forward.1} parent=79 // pred_check
          %p2362 = pneg %p363
        $region102: #{net_forward.1} parent=79 // pred_check_branch
          %2364 = sbr.rel (%p2362) target = $region104
        $region103: #{net_forward.1} parent=79 // pred_region
          %2366 = vsyncadd [#allocation4], 0
          %s2368 = sshll.u32 [#allocation11], 4
          %s2369 = int_to_ptr.vmem [resolvable:$true] %s2368
          %s2370 = sshll.u32 %s15, 4
          %s2371 = int_to_ptr.hbm [resolvable:$true] %s2370
          %2373 = dma.vmem_to_hbm [thread:$0]  %s2369, 32, %s2371, [#allocation4]
        $region104: #{net_forward.1} parent=79 // pred_fallthru
          _
        // Predicated region
        $region105: #{net_forward.1} parent=79 // pred_check
          %p2374 = pneg %p363
        $region106: #{net_forward.1} parent=79 // pred_check_branch
          %2376 = sbr.rel (%p2374) target = $region108
        $region107: #{net_forward.1} parent=79 // pred_region
          %2378 = dma.done [#allocation4], 32
        $region108: #{net_forward.1} parent=79 // pred_fallthru
          _
      $region80: #{net_forward.1} parent=5 // pred_fallthru
        _
      %p2379 = scmp.le.s32.totalorder 2, %s25
      // Predicated region
      $region109: #{net_forward.1} parent=5 // pred_check
        %p2380 = pneg %p2379
      $region110: #{net_forward.1} parent=5 // pred_check_branch
        %2382 = sbr.rel (%p2380) target = $region112
      $region111: #{net_forward.1} parent=5 // pred_region
        %s2383 = ssub.s32 %s25, 2
      $region112: #{net_forward.1} parent=5 // pred_fallthru
        _
    $region6: #{net_forward.1} parent=1 // loop_footer
      %s29 = sadd.s32 1, %s25
    $region7: #{net_forward.1} parent=1 // loop_footer_branch
      %24 = sbr.rel target = $region3
    $region8: #{net_forward.1} parent=1 // loop_exit
      _
    %2384 = vsyncpa [#allocation3], 1
    %s2385 = scalar_lea.sflag [#allocation3], 1
    %2386 = vsyncpa %s2385, 1
    %2387 = vsyncpa [#allocation6], 1
    %2388 = vsyncpa [#allocation9], 1
    %2389 = vsyncpa [#allocation4], 1
    %s2390 = scalar_lea.sflag [#allocation4], 1
    %2391 = vsyncpa %s2390, 1

</llo_original>
